<compile_context>
chip_gen: v5e
topology: v5e:2x2
jax: 0.10.0
libtpu: 0.0.40
codegen_flags: <defaults>
</compile_context>

<pallas_src>
from functools import partial
from itertools import chain

import numpy as np
import jax
import jax.numpy as jnp
from jax import lax
from jax.experimental import pallas as pl
from jax.experimental.pallas import tpu as pltpu


# --------------------------------------------------------------------------
# small helpers
# --------------------------------------------------------------------------

def _round_up(x, m):
    return ((x + m - 1) // m) * m


def _ffn_chunk(ff):
    """FF-dimension tile (lane multiple) used to avoid a full (S, FF) slab."""
    if ff <= 512:
        return ff
    for c in (512, 384, 256, 128):
        if ff % c == 0:
            return c
    return ff


def _vmem_limit_bytes(needed_bytes):
    cap = 64 << 20                          # conservative default (v7x per-TC VMEM)
    try:
        cap = int(pltpu.get_tpu_info().vmem_capacity_bytes)
    except Exception:
        pass
    hi = max(int(cap * 0.9), 32 << 20)
    return int(min(max(2 * int(needed_bytes), 32 << 20), hi))


def _probe_single_buffered_weights():
    """Check pl.Buffered(1) (single-buffered resident blocks) is supported."""
    try:
        def k(w_ref, o_ref):
            o_ref[...] = w_ref[...] + 1.0

        f = pl.pallas_call(
            k,
            out_shape=jax.ShapeDtypeStruct((8, 128), jnp.float32),
            grid=(2,),
            in_specs=[pl.BlockSpec((8, 128), lambda i: (0, 0),
                                   pipeline_mode=pl.Buffered(1))],
            out_specs=pl.BlockSpec((8, 128), lambda i: (0, 0)),
        )
        jax.block_until_ready(f(jnp.zeros((8, 128), jnp.float32)))
        return True
    except Exception:
        return False


def _rep_spec(shape):
    """Replicated (grid-invariant) weight block, single-buffered when supported."""
    idx = lambda b: (0,) * len(shape)
    if _SINGLE_BUFFER_WEIGHTS:
        return pl.BlockSpec(shape, idx, pipeline_mode=pl.Buffered(1))
    return pl.BlockSpec(shape, idx)


# --------------------------------------------------------------------------
# in-kernel math helpers (f32 statistics)
# --------------------------------------------------------------------------

def _layernorm(x, g, b, eps):
    mu = jnp.mean(x, axis=-1, keepdims=True)
    var = jnp.mean((x - mu) ** 2, axis=-1, keepdims=True)
    return (x - mu) * lax.rsqrt(var + eps) * g + b


def _gelu_tanh(x):
    return 0.5 * x * (1.0 + jnp.tanh(0.7978845608028654 * (x + 0.044715 * x * x * x)))


# --------------------------------------------------------------------------
# Pallas kernels
# --------------------------------------------------------------------------

def _emb_ln_kernel(x_ref, g_ref, b_ref, o_ref, *, eps):
    x = x_ref[0].astype(jnp.float32)                       # (S, H)
    o_ref[0] = _layernorm(x, g_ref[...], b_ref[...], eps).astype(o_ref.dtype)


def embedding_layernorm(x, gamma, beta, eps=1e-12):
    """Plain layernorm (no residual); grid over batch, batch-parallel, bf16 I/O."""
    B, S, H = x.shape
    itemsize = jnp.dtype(x.dtype).itemsize
    vmem_limit = _vmem_limit_bytes(4 * S * H * itemsize + 2 * S * H * 4)
    ce = pl.CostEstimate(flops=int(10 * B * S * H),
                         transcendentals=int(B * S),
                         bytes_accessed=int(B * S * H * (itemsize + 2)))
    return pl.pallas_call(
        partial(_emb_ln_kernel, eps=eps),
        out_shape=jax.ShapeDtypeStruct((B, S, H), jnp.bfloat16),
        grid=(B,),
        in_specs=[pl.BlockSpec((1, S, H), lambda b: (b, 0, 0)),
                  _rep_spec((1, H)), _rep_spec((1, H))],
        out_specs=pl.BlockSpec((1, S, H), lambda b: (b, 0, 0)),
        cost_estimate=ce,
        compiler_params=pltpu.CompilerParams(
            dimension_semantics=("parallel",),
            vmem_limit_bytes=vmem_limit),
    )(x, gamma.reshape(1, H), beta.reshape(1, H))


def _layer_kernel(x_ref, mask_ref, wqkv_ref, bqkv_ref, wo_ref, bo_ref,
                  ln1g_ref, ln1b_ref, wi_ref, bi_ref, wd_ref, bd_ref,
                  ln2g_ref, ln2b_ref, o_ref, ctx_ref,
                  *, num_heads, dp, ff_chunk, eps):
    x = x_ref[0]                                           # (S, H) bf16
    S, H = x.shape
    Hp = num_heads * dp
    add_mask = mask_ref[0]                                 # (1, S) f32 additive key mask

    # ---- fused QKV projection into a lane-aligned padded-head layout --------
    # (1/sqrt(dh) is folded into the q weight on the host)
    qkv = jnp.dot(x, wqkv_ref[...], preferred_element_type=jnp.float32)
    qkv = (qkv + bqkv_ref[...]).astype(jnp.bfloat16)       # (S, 3*Hp)

    # ---- attention: per-head, context written straight into VMEM scratch ----
    # (no jnp.concatenate relayout; every slice is 128-lane aligned)
    for h in range(num_heads):                             # static unroll, nH small
        qh = qkv[:, h * dp:(h + 1) * dp]
        kh = qkv[:, Hp + h * dp:Hp + (h + 1) * dp]
        vh = qkv[:, 2 * Hp + h * dp:2 * Hp + (h + 1) * dp]
        s = lax.dot_general(qh, kh, (((1,), (1,)), ((), ())),
                            preferred_element_type=jnp.float32)        # (S, S)
        s = s + add_mask
        p = jnp.exp(s - jnp.max(s, axis=-1, keepdims=True))
        p = p * pl.reciprocal(jnp.sum(p, axis=-1, keepdims=True), approx=False)
        ctx_ref[:, h * dp:(h + 1) * dp] = jnp.dot(
            p.astype(jnp.bfloat16), vh,
            preferred_element_type=jnp.float32).astype(jnp.bfloat16)

    # ---- output projection + residual + LN1 (f32 stats) ---------------------
    attn_out = jnp.dot(ctx_ref[...], wo_ref[...],
                       preferred_element_type=jnp.float32) + bo_ref[...]
    x1 = _layernorm(attn_out + x.astype(jnp.float32),
                    ln1g_ref[...], ln1b_ref[...], eps)
    x1_b = x1.astype(jnp.bfloat16)

    # ---- FFN tiled over FF: the (S, FF) slab is never materialised ----------
    FF = wi_ref.shape[1]
    ffn = jnp.zeros((S, H), jnp.float32)
    for c in range(FF // ff_chunk):                        # static unroll
        lo = c * ff_chunk
        hi = lo + ff_chunk
        inter = jnp.dot(x1_b, wi_ref[:, lo:hi],
                        preferred_element_type=jnp.float32) + bi_ref[:, lo:hi]
        inter = _gelu_tanh(inter).astype(jnp.bfloat16)
        ffn = ffn + jnp.dot(inter, wd_ref[lo:hi, :],
                            preferred_element_type=jnp.float32)
    ffn = ffn + bd_ref[...]
    x2 = _layernorm(ffn + x1, ln2g_ref[...], ln2b_ref[...], eps)

    o_ref[0] = x2.astype(o_ref.dtype)


def fused_encoder_layer(x, add_mask, lp, *, num_heads, eps=1e-12):
    B, S, H = x.shape
    Hp = lp["wqkv"].shape[1] // 3
    dp = Hp // num_heads
    FF = lp["wi"].shape[1]
    CF = _ffn_chunk(FF)

    bf, f4 = 2, 4
    w_bytes = ((H * 3 * Hp + Hp * H + H * FF + FF * H) * bf
               + (3 * Hp + 6 * H + FF) * f4)
    w_resident = w_bytes if _SINGLE_BUFFER_WEIGHTS else 2 * w_bytes
    act_bytes = (4 * S * H * bf                 # double-buffered activation in/out
                 + S * 3 * Hp * (f4 + bf)       # qkv f32 + bf16
                 + 3 * S * S * f4               # per-head scores / probs temps
                 + S * Hp * bf                  # ctx scratch
                 + 3 * S * H * f4               # x1 / ffn accum / x2
                 + S * CF * (f4 + bf))          # FFN chunk intermediate
    vmem_limit = _vmem_limit_bytes(w_resident + act_bytes)

    flops = int(B * (2 * S * H * 3 * Hp                  # qkv projection
                     + num_heads * 4 * S * S * dp        # scores + context
                     + 2 * S * Hp * H                    # output projection
                     + 4 * S * H * FF))                  # FFN
    transcendentals = int(B * (num_heads * S * S + S * FF))
    bytes_accessed = int(w_bytes + B * (2 * S * H * bf + S * f4))

    return pl.pallas_call(
        partial(_layer_kernel, num_heads=num_heads, dp=dp, ff_chunk=CF, eps=eps),
        out_shape=jax.ShapeDtypeStruct((B, S, H), jnp.bfloat16),
        grid=(B,),
        in_specs=[
            pl.BlockSpec((1, S, H), lambda b: (b, 0, 0)),  # activations
            pl.BlockSpec((1, 1, S), lambda b: (b, 0, 0)),  # additive key mask
            _rep_spec((H, 3 * Hp)), _rep_spec((1, 3 * Hp)),  # wqkv, bqkv
            _rep_spec((Hp, H)), _rep_spec((1, H)),           # wo, bo
            _rep_spec((1, H)), _rep_spec((1, H)),            # ln1 gamma/beta
            _rep_spec((H, FF)), _rep_spec((1, FF)),          # wi, bi
            _rep_spec((FF, H)), _rep_spec((1, H)),           # wd, bd
            _rep_spec((1, H)), _rep_spec((1, H)),            # ln2 gamma/beta
        ],
        out_specs=pl.BlockSpec((1, S, H), lambda b: (b, 0, 0)),
        scratch_shapes=[pltpu.VMEM((S, Hp), jnp.bfloat16)],
        input_output_aliases={0: 0},
        cost_estimate=pl.CostEstimate(flops=flops,
                                      transcendentals=transcendentals,
                                      bytes_accessed=bytes_accessed),
        compiler_params=pltpu.CompilerParams(
            dimension_semantics=("parallel",),
            vmem_limit_bytes=vmem_limit),
    )(x, add_mask,
      lp["wqkv"], lp["bqkv"], lp["wo"], lp["bo"],
      lp["ln1_g"], lp["ln1_b"], lp["wi"], lp["bi"], lp["wd"], lp["bd"],
      lp["ln2_g"], lp["ln2_b"])


def _pool_first_kernel(idx_ref, mask_ref, h_ref, o_ref, *, W):
    b = pl.program_id(0)
    h = h_ref[0].astype(jnp.float32)                       # (S, H) full hidden states
    Hdim = h.shape[1]
    for w in range(W):                                     # static unroll, W small
        i = idx_ref[b, w]                                  # first-wordpiece index (+1 for CLS)
        m = mask_ref[b, w].astype(jnp.float32)             # 0/1 word (non-pad) mask
        row = lax.dynamic_slice(h, (i, 0), (1, Hdim))      # (1, H)
        o_ref[0, w:w + 1, :] = row * m


def pool_first(first_idx_p1, word_mask, last_hidden):
    """pool_method='first': gather each word's first wordpiece hidden state."""
    B, W = first_idx_p1.shape
    _, S, H = last_hidden.shape
    ce = pl.CostEstimate(flops=int(B * W * H), transcendentals=0,
                         bytes_accessed=int(B * S * H * 2 + B * W * H * 4))
    return pl.pallas_call(
        partial(_pool_first_kernel, W=W),
        out_shape=jax.ShapeDtypeStruct((B, W, H), jnp.float32),
        grid=(B,),
        in_specs=[pl.BlockSpec(memory_space=pltpu.MemorySpace.SMEM),  # indices
                  pl.BlockSpec(memory_space=pltpu.MemorySpace.SMEM),  # word mask
                  pl.BlockSpec((1, S, H), lambda b: (b, 0, 0))],
        out_specs=pl.BlockSpec((1, W, H), lambda b: (b, 0, 0)),
        cost_estimate=ce,
        compiler_params=pltpu.CompilerParams(dimension_semantics=("parallel",)),
    )(first_idx_p1, word_mask, last_hidden)


# Resolve the Buffered(1) capability eagerly (never inside a jit trace).
_SINGLE_BUFFER_WEIGHTS = _probe_single_buffered_weights()


# --------------------------------------------------------------------------
# Synthetic BERT-style encoder (parameters initialized deterministically)
# --------------------------------------------------------------------------

def init_params(key, H, nH, FF, L, wp_vocab, max_pos):
    dh = H // nH
    dp = _round_up(dh, 128)                 # lane-aligned padded per-head dim
    scale = 1.0 / float(np.sqrt(dh))

    def nrm(k, shape):
        return jax.random.normal(k, shape, jnp.float32) * 0.02

    def pad_cols(w):                        # (H,H) -> (H, nH*dp): pad head columns
        return jnp.pad(w.reshape(H, nH, dh),
                       ((0, 0), (0, 0), (0, dp - dh))).reshape(H, nH * dp)

    def pad_rows(w):                        # (H,H) -> (nH*dp, H): pad head rows
        return jnp.pad(w.reshape(nH, dh, H),
                       ((0, 0), (0, dp - dh), (0, 0))).reshape(nH * dp, H)

    keys = jax.random.split(key, 4 + L)
    params = {
        "tok_emb": nrm(keys[0], (wp_vocab, H)),
        "pos_emb": nrm(keys[1], (max_pos, H)),
        "typ_emb": nrm(keys[2], (2, H)),
        "emb_ln_g": jnp.ones((H,), jnp.float32),
        "emb_ln_b": jnp.zeros((H,), jnp.float32),
        "layers": [],
    }
    for li in range(L):
        ks = jax.random.split(keys[4 + li], 6)
        wq = pad_cols(nrm(ks[0], (H, H)) * scale)   # fold 1/sqrt(dh) into q weight
        wk = pad_cols(nrm(ks[1], (H, H)))
        wv = pad_cols(nrm(ks[2], (H, H)))
        params["layers"].append({
            "wqkv": jnp.concatenate([wq, wk, wv], axis=1).astype(jnp.bfloat16),
            "bqkv": jnp.zeros((1, 3 * nH * dp), jnp.float32),
            "wo": pad_rows(nrm(ks[3], (H, H))).astype(jnp.bfloat16),
            "bo": jnp.zeros((1, H), jnp.float32),
            "ln1_g": jnp.ones((1, H), jnp.float32),
            "ln1_b": jnp.zeros((1, H), jnp.float32),
            "wi": nrm(ks[4], (H, FF)).astype(jnp.bfloat16),
            "bi": jnp.zeros((1, FF), jnp.float32),
            "wd": nrm(ks[5], (FF, H)).astype(jnp.bfloat16),
            "bd": jnp.zeros((1, H), jnp.float32),
            "ln2_g": jnp.ones((1, H), jnp.float32),
            "ln2_b": jnp.zeros((1, H), jnp.float32),
        })
    return params


def encoder_forward(params, input_ids, token_type_ids, attn_mask, *, num_heads):
    B, S = input_ids.shape
    # embedding gathers are table-lookup glue, not the hot path
    x = (jnp.take(params["tok_emb"], input_ids, axis=0)
         + params["pos_emb"][:S][None, :, :]
         + jnp.take(params["typ_emb"], token_type_ids, axis=0))          # (B,S,H) f32
    # memory-bound LN kernel gets bf16 input; statistics stay f32 in-kernel
    x = embedding_layernorm(x.astype(jnp.bfloat16),
                            params["emb_ln_g"], params["emb_ln_b"])      # bf16
    # additive key mask precomputed once: 0 for real tokens, -1e4 for padding
    add_mask = ((attn_mask.astype(jnp.float32) - 1.0) * 1e4)[:, None, :]  # (B,1,S)
    for lp in params["layers"]:
        x = fused_encoder_layer(x, add_mask, lp, num_heads=num_heads)
    return x                                                             # (B,S,H) bf16


# --------------------------------------------------------------------------
# Main: reproduce _TransformersWordModel.forward semantics
# --------------------------------------------------------------------------

if __name__ == "__main__":
    key = jax.random.PRNGKey(0)
    kp, kw = jax.random.split(key)

    # model / vocab config (small toy shapes; real perf numbers need H,S >= 128)
    B, W = 2, 8                 # batch, max word length
    H, nH, FF, L = 64, 2, 128, 2
    VOCAB = 20                  # word vocab size
    WP_VOCAB = 64               # wordpiece vocab size
    MAX_POS = 64                # max_position_embeddings
    PAD, UNK = 0, 1             # word-vocab padding / unknown indices
    WP_PAD, CLS, SEP = 0, 2, 3  # wordpiece pad / cls / sep ids

    # deterministic synthetic word -> wordpieces table (1 or 2 pieces per word)
    word_to_wordpieces = []
    for i in range(VOCAB):
        if i == PAD:
            word_to_wordpieces.append([WP_PAD])
        elif i % 3 == 0:
            word_to_wordpieces.append([10 + i, 11 + i])
        else:
            word_to_wordpieces.append([10 + i])
    word_pieces_lengths = np.array([len(p) for p in word_to_wordpieces], dtype=np.int32)

    # input words: (B, W) int32 with trailing padding
    words_np = np.array(jax.random.randint(kw, (B, W), 2, VOCAB), dtype=np.int32)
    words_np[0, 6:] = PAD
    words_np[1, 5:] = PAD

    # ---- host-side preprocessing (mirrors the torch.no_grad numpy loop) ----
    word_mask = (words_np != PAD)                                   # (B, W)
    seq_len = word_mask.sum(-1)                                     # (B,)
    batch_wp_len = word_pieces_lengths[words_np] * word_mask        # (B, W)
    wp_lens = batch_wp_len.sum(-1)                                  # (B,)
    max_wp = int(wp_lens.max())
    assert max_wp + 2 <= MAX_POS - 2, "shapes chosen so no auto_truncate needed"
    S = max_wp + 2
    word_pieces = np.full((B, S), WP_PAD, dtype=np.int32)
    attn_masks = np.zeros((B, S), dtype=np.int32)
    for i in range(B):
        pieces = list(chain(*[word_to_wordpieces[w] for w in words_np[i, :seq_len[i]]]))
        word_pieces[i, 1:wp_lens[i] + 1] = np.array(pieces, dtype=np.int32)
        attn_masks[i, :wp_lens[i] + 2] = 1
    word_pieces[:, 0] = CLS
    word_pieces[np.arange(B), wp_lens + 1] = SEP
    token_type_ids = np.zeros_like(word_pieces)

    # ---- encoder (fused Pallas kernels, jit-compiled as one program) ----
    params = init_params(kp, H, nH, FF, L, WP_VOCAB, MAX_POS)
    encoder_jit = jax.jit(encoder_forward, static_argnames=("num_heads",))
    last_hidden = encoder_jit(params,
                              jnp.asarray(word_pieces),
                              jnp.asarray(token_type_ids),
                              jnp.asarray(attn_masks),
                              num_heads=nH)                         # (B, S, H) bf16

    # ---- pool_method='first' gather (SMEM-indexed row gather kernel) ----
    cum = np.zeros((B, W + 1), dtype=np.int32)
    cum[:, 1:] = np.cumsum(batch_wp_len, axis=-1)
    first_idx = cum[:, :W].copy()
    first_idx[first_idx >= max_wp] = 0                              # masked_fill(ge(max_wp), 0)
    first_idx_p1 = first_idx + 1                                    # +1 skips the CLS row

    pooled = pool_first(jnp.asarray(first_idx_p1),
                        jnp.asarray(word_mask.astype(np.int32)),
                        last_hidden)                                # (B, W, H) f32

    # layers='-1', include_cls_sep=False -> num_layers x batch x max_len x hidden
    outputs = pooled[None]                                          # (1, B, W, H)
    outputs = jax.block_until_ready(outputs)
    assert outputs.shape == (1, B, W, H)
    assert outputs.dtype == jnp.float32
    print("KERNEL_OK")
</pallas_src>

<mosaic_0001>
module attributes {stable_mosaic.version = 11 : i64} {
  func.func @k(%arg0: i32, %arg1: memref<8x128xf32, #tpu.memory_space<vmem>>, %arg2: memref<8x128xf32, #tpu.memory_space<vmem>>) attributes {dimension_semantics = [#tpu.dimension_semantics<arbitrary>], iteration_bounds = array<i64: 2>, scalar_prefetch = 0 : i64, scratch_operands = 0 : i64, tpu.core_type = #tpu.core_type<tc>, window_params = [{pipeline_mode = #tpu.pipeline_mode<synchronous>, transform_indices = @transform_0, window_bounds = array<i64: 8, 128>}, {pipeline_mode = #tpu.pipeline_mode<synchronous>, transform_indices = @transform_1, window_bounds = array<i64: 8, 128>}]} {
    %c0 = arith.constant 0 : index
    %c0_0 = arith.constant 0 : index
    %0 = vector.load %arg1[%c0, %c0_0] : memref<8x128xf32, #tpu.memory_space<vmem>>, vector<8x128xf32>
    %cst = arith.constant 1.000000e+00 : f32
    %1 = vector.broadcast %cst : f32 to vector<8x128xf32>
    %2 = arith.addf %0, %1 : vector<8x128xf32>
    %c0_1 = arith.constant 0 : index
    %c0_2 = arith.constant 0 : index
    %3 = vector.load %arg2[%c0_1, %c0_2] : memref<8x128xf32, #tpu.memory_space<vmem>>, vector<8x128xf32>
    tpu.vector_store %arg2[%c0_1, %c0_2], %2 {strides = array<i32>} : memref<8x128xf32, #tpu.memory_space<vmem>>, vector<8x128xf32>,
    return
  }
  func.func @transform_0(%arg0: i32) -> (i32, i32) {
    %c0_i32 = arith.constant 0 : i32
    %c0_i32_0 = arith.constant 0 : i32
    %c0_i32_1 = arith.constant 0 : i32
    return %c0_i32, %c0_i32_0 : i32, i32
  }
  func.func @transform_1(%arg0: i32) -> (i32, i32) {
    %c0_i32 = arith.constant 0 : i32
    %c0_i32_0 = arith.constant 0 : i32
    %c0_i32_1 = arith.constant 0 : i32
    return %c0_i32, %c0_i32_0 : i32, i32
  }
}

module attributes {stable_mosaic.version = 11 : i64} {
  func.func @_emb_ln_kernel(%arg0: i32, %arg1: memref<1x10x64xbf16, #tpu.memory_space<vmem>>, %arg2: memref<1x64xf32, #tpu.memory_space<vmem>>, %arg3: memref<1x64xf32, #tpu.memory_space<vmem>>, %arg4: memref<1x10x64xbf16, #tpu.memory_space<vmem>>) attributes {dimension_semantics = [#tpu.dimension_semantics<parallel>], iteration_bounds = array<i64: 2>, scalar_prefetch = 0 : i64, scratch_operands = 0 : i64, tpu.core_type = #tpu.core_type<tc>, window_params = [{transform_indices = @transform_0, window_bounds = array<i64: 1, 10, 64>}, {pipeline_mode = #tpu.pipeline_mode<synchronous>, transform_indices = @transform_1, window_bounds = array<i64: 1, 64>}, {pipeline_mode = #tpu.pipeline_mode<synchronous>, transform_indices = @transform_2, window_bounds = array<i64: 1, 64>}, {transform_indices = @transform_3, window_bounds = array<i64: 1, 10, 64>}]} {
    %c0 = arith.constant 0 : index
    %c0_0 = arith.constant 0 : index
    %c0_1 = arith.constant 0 : index
    %0 = vector.load %arg1[%c0, %c0_0, %c0_1] : memref<1x10x64xbf16, #tpu.memory_space<vmem>>, vector<1x10x64xbf16>
    %1 = vector.shape_cast %0 : vector<1x10x64xbf16> to vector<10x64xbf16>
    %2 = arith.extf %1 : vector<10x64xbf16> to vector<10x64xf32>
    %c0_2 = arith.constant 0 : index
    %c0_3 = arith.constant 0 : index
    %3 = vector.load %arg2[%c0_2, %c0_3] : memref<1x64xf32, #tpu.memory_space<vmem>>, vector<1x64xf32>
    %c0_4 = arith.constant 0 : index
    %c0_5 = arith.constant 0 : index
    %4 = vector.load %arg3[%c0_4, %c0_5] : memref<1x64xf32, #tpu.memory_space<vmem>>, vector<1x64xf32>
    %cst = arith.constant dense<0.000000e+00> : vector<10xf32>
    %5 = vector.multi_reduction <add>, %2, %cst [1] : vector<10x64xf32> to vector<10xf32>
    %6 = vector.shape_cast %5 : vector<10xf32> to vector<10x1xf32>
    %cst_6 = arith.constant 6.400000e+01 : f32
    %7 = vector.broadcast %cst_6 : f32 to vector<10x1xf32>
    %8 = arith.divf %6, %7 : vector<10x1xf32>
    %9 = vector.broadcast %8 : vector<10x1xf32> to vector<10x64xf32>
    %10 = arith.subf %2, %9 : vector<10x64xf32>
    %11 = arith.mulf %10, %10 : vector<10x64xf32>
    %cst_7 = arith.constant dense<0.000000e+00> : vector<10xf32>
    %12 = vector.multi_reduction <add>, %11, %cst_7 [1] : vector<10x64xf32> to vector<10xf32>
    %13 = vector.shape_cast %12 : vector<10xf32> to vector<10x1xf32>
    %cst_8 = arith.constant 6.400000e+01 : f32
    %14 = vector.broadcast %cst_8 : f32 to vector<10x1xf32>
    %15 = arith.divf %13, %14 : vector<10x1xf32>
    %16 = vector.broadcast %8 : vector<10x1xf32> to vector<10x64xf32>
    %17 = arith.subf %2, %16 : vector<10x64xf32>
    %cst_9 = arith.constant 9.99999996E-13 : f32
    %18 = vector.broadcast %cst_9 : f32 to vector<10x1xf32>
    %19 = arith.addf %15, %18 : vector<10x1xf32>
    %20 = math.rsqrt %19 : vector<10x1xf32>
    %21 = vector.broadcast %20 : vector<10x1xf32> to vector<10x64xf32>
    %22 = arith.mulf %17, %21 : vector<10x64xf32>
    %23 = vector.broadcast %3 : vector<1x64xf32> to vector<10x64xf32>
    %24 = arith.mulf %22, %23 : vector<10x64xf32>
    %25 = vector.broadcast %4 : vector<1x64xf32> to vector<10x64xf32>
    %26 = arith.addf %24, %25 : vector<10x64xf32>
    %27 = arith.truncf %26 : vector<10x64xf32> to vector<10x64xbf16>
    %c0_10 = arith.constant 0 : index
    %c0_11 = arith.constant 0 : index
    %c0_12 = arith.constant 0 : index
    %28 = vector.load %arg4[%c0_10, %c0_11, %c0_12] : memref<1x10x64xbf16, #tpu.memory_space<vmem>>, vector<1x10x64xbf16>
    %29 = vector.shape_cast %28 : vector<1x10x64xbf16> to vector<10x64xbf16>
    %30 = vector.shape_cast %27 : vector<10x64xbf16> to vector<1x10x64xbf16>
    tpu.vector_store %arg4[%c0_10, %c0_11, %c0_12], %30 {strides = array<i32>} : memref<1x10x64xbf16, #tpu.memory_space<vmem>>, vector<1x10x64xbf16>,
    return
  }
  func.func @transform_0(%arg0: i32) -> (i32, i32, i32) {
    %c0_i32 = arith.constant 0 : i32
    %c0_i32_0 = arith.constant 0 : i32
    %c0_i32_1 = arith.constant 0 : i32
    return %arg0, %c0_i32, %c0_i32_0 : i32, i32, i32
  }
  func.func @transform_1(%arg0: i32) -> (i32, i32) {
    %c0_i32 = arith.constant 0 : i32
    %c0_i32_0 = arith.constant 0 : i32
    %c0_i32_1 = arith.constant 0 : i32
    return %c0_i32, %c0_i32_0 : i32, i32
  }
  func.func @transform_2(%arg0: i32) -> (i32, i32) {
    %c0_i32 = arith.constant 0 : i32
    %c0_i32_0 = arith.constant 0 : i32
    %c0_i32_1 = arith.constant 0 : i32
    return %c0_i32, %c0_i32_0 : i32, i32
  }
  func.func @transform_3(%arg0: i32) -> (i32, i32, i32) {
    %c0_i32 = arith.constant 0 : i32
    %c0_i32_0 = arith.constant 0 : i32
    %c0_i32_1 = arith.constant 0 : i32
    return %arg0, %c0_i32, %c0_i32_0 : i32, i32, i32
  }
}

module attributes {stable_mosaic.version = 11 : i64} {
  func.func @_layer_kernel(%arg0: i32, %arg1: memref<1x10x64xbf16, #tpu.memory_space<vmem>>, %arg2: memref<1x1x10xf32, #tpu.memory_space<vmem>>, %arg3: memref<64x768xbf16, #tpu.memory_space<vmem>>, %arg4: memref<1x768xf32, #tpu.memory_space<vmem>>, %arg5: memref<256x64xbf16, #tpu.memory_space<vmem>>, %arg6: memref<1x64xf32, #tpu.memory_space<vmem>>, %arg7: memref<1x64xf32, #tpu.memory_space<vmem>>, %arg8: memref<1x64xf32, #tpu.memory_space<vmem>>, %arg9: memref<64x128xbf16, #tpu.memory_space<vmem>>, %arg10: memref<1x128xf32, #tpu.memory_space<vmem>>, %arg11: memref<128x64xbf16, #tpu.memory_space<vmem>>, %arg12: memref<1x64xf32, #tpu.memory_space<vmem>>, %arg13: memref<1x64xf32, #tpu.memory_space<vmem>>, %arg14: memref<1x64xf32, #tpu.memory_space<vmem>>, %arg15: memref<1x10x64xbf16, #tpu.memory_space<vmem>>, %arg16: memref<10x256xbf16, #tpu.memory_space<vmem>>) attributes {dimension_semantics = [#tpu.dimension_semantics<parallel>], iteration_bounds = array<i64: 2>, scalar_prefetch = 0 : i64, scratch_operands = 1 : i64, tpu.core_type = #tpu.core_type<tc>, window_params = [{transform_indices = @transform_0, window_bounds = array<i64: 1, 10, 64>}, {transform_indices = @transform_1, window_bounds = array<i64: 1, 1, 10>}, {pipeline_mode = #tpu.pipeline_mode<synchronous>, transform_indices = @transform_2, window_bounds = array<i64: 64, 768>}, {pipeline_mode = #tpu.pipeline_mode<synchronous>, transform_indices = @transform_3, window_bounds = array<i64: 1, 768>}, {pipeline_mode = #tpu.pipeline_mode<synchronous>, transform_indices = @transform_4, window_bounds = array<i64: 256, 64>}, {pipeline_mode = #tpu.pipeline_mode<synchronous>, transform_indices = @transform_5, window_bounds = array<i64: 1, 64>}, {pipeline_mode = #tpu.pipeline_mode<synchronous>, transform_indices = @transform_6, window_bounds = array<i64: 1, 64>}, {pipeline_mode = #tpu.pipeline_mode<synchronous>, transform_indices = @transform_7, window_bounds = array<i64: 1, 64>}, {pipeline_mode = #tpu.pipeline_mode<synchronous>, transform_indices = @transform_8, window_bounds = array<i64: 64, 128>}, {pipeline_mode = #tpu.pipeline_mode<synchronous>, transform_indices = @transform_9, window_bounds = array<i64: 1, 128>}, {pipeline_mode = #tpu.pipeline_mode<synchronous>, transform_indices = @transform_10, window_bounds = array<i64: 128, 64>}, {pipeline_mode = #tpu.pipeline_mode<synchronous>, transform_indices = @transform_11, window_bounds = array<i64: 1, 64>}, {pipeline_mode = #tpu.pipeline_mode<synchronous>, transform_indices = @transform_12, window_bounds = array<i64: 1, 64>}, {pipeline_mode = #tpu.pipeline_mode<synchronous>, transform_indices = @transform_13, window_bounds = array<i64: 1, 64>}, {transform_indices = @transform_14, window_bounds = array<i64: 1, 10, 64>}]} {
    %c0 = arith.constant 0 : index
    %c0_0 = arith.constant 0 : index
    %c0_1 = arith.constant 0 : index
    %0 = vector.load %arg1[%c0, %c0_0, %c0_1] : memref<1x10x64xbf16, #tpu.memory_space<vmem>>, vector<1x10x64xbf16>
    %1 = vector.shape_cast %0 : vector<1x10x64xbf16> to vector<10x64xbf16>
    %c0_2 = arith.constant 0 : index
    %c0_3 = arith.constant 0 : index
    %c0_4 = arith.constant 0 : index
    %2 = vector.load %arg2[%c0_2, %c0_3, %c0_4] : memref<1x1x10xf32, #tpu.memory_space<vmem>>, vector<1x1x10xf32>
    %3 = vector.shape_cast %2 : vector<1x1x10xf32> to vector<1x10xf32>
    %c0_5 = arith.constant 0 : index
    %c0_6 = arith.constant 0 : index
    %4 = vector.load %arg3[%c0_5, %c0_6] : memref<64x768xbf16, #tpu.memory_space<vmem>>, vector<64x768xbf16>
    %cst = arith.constant dense<0.000000e+00> : vector<10x768xf32>
    %5 = tpu.matmul %1, %4, %cst {dimension_numbers = #tpu.dot_dimension_numbers<[1], [0], [0], [1], [0, 0, 1, 1], [], []>} : vector<10x64xbf16>, vector<64x768xbf16>, vector<10x768xf32> -> vector<10x768xf32>
    %c0_7 = arith.constant 0 : index
    %c0_8 = arith.constant 0 : index
    %6 = vector.load %arg4[%c0_7, %c0_8] : memref<1x768xf32, #tpu.memory_space<vmem>>, vector<1x768xf32>
    %7 = vector.broadcast %6 : vector<1x768xf32> to vector<10x768xf32>
    %8 = arith.addf %5, %7 : vector<10x768xf32>
    %9 = arith.truncf %8 : vector<10x768xf32> to vector<10x768xbf16>
    %10 = vector.extract_strided_slice %9 {offsets = [0, 0], sizes = [10, 128], strides = [1, 1]} : vector<10x768xbf16> to vector<10x128xbf16>
    %11 = vector.extract_strided_slice %9 {offsets = [0, 256], sizes = [10, 128], strides = [1, 1]} : vector<10x768xbf16> to vector<10x128xbf16>
    %12 = vector.extract_strided_slice %9 {offsets = [0, 512], sizes = [10, 128], strides = [1, 1]} : vector<10x768xbf16> to vector<10x128xbf16>
    %cst_9 = arith.constant dense<0.000000e+00> : vector<10x10xf32>
    %13 = tpu.matmul %10, %11, %cst_9 {dimension_numbers = #tpu.dot_dimension_numbers<[1], [1], [0], [0], [0, 0, 1, 0], [], []>} : vector<10x128xbf16>, vector<10x128xbf16>, vector<10x10xf32> -> vector<10x10xf32>
    %14 = vector.broadcast %3 : vector<1x10xf32> to vector<10x10xf32>
    %15 = arith.addf %13, %14 : vector<10x10xf32>
    %cst_10 = arith.constant dense<0xFF800000> : vector<10xf32>
    %16 = vector.multi_reduction <maximumf>, %15, %cst_10 [1] : vector<10x10xf32> to vector<10xf32>
    %17 = vector.shape_cast %16 : vector<10xf32> to vector<10x1xf32>
    %18 = vector.broadcast %17 : vector<10x1xf32> to vector<10x10xf32>
    %19 = arith.subf %15, %18 : vector<10x10xf32>
    %20 = math.exp %19 : vector<10x10xf32>
    %cst_11 = arith.constant dense<0.000000e+00> : vector<10xf32>
    %21 = vector.multi_reduction <add>, %20, %cst_11 [1] : vector<10x10xf32> to vector<10xf32>
    %22 = vector.shape_cast %21 : vector<10xf32> to vector<10x1xf32>
    %23 = tpu.reciprocal %22 : vector<10x1xf32> -> vector<10x1xf32>
    %24 = vector.broadcast %23 : vector<10x1xf32> to vector<10x10xf32>
    %25 = arith.mulf %20, %24 : vector<10x10xf32>
    %26 = arith.truncf %25 : vector<10x10xf32> to vector<10x10xbf16>
    %cst_12 = arith.constant dense<0.000000e+00> : vector<10x128xf32>
    %27 = tpu.matmul %26, %12, %cst_12 {dimension_numbers = #tpu.dot_dimension_numbers<[1], [0], [0], [1], [0, 0, 1, 1], [], []>} : vector<10x10xbf16>, vector<10x128xbf16>, vector<10x128xf32> -> vector<10x128xf32>
    %28 = arith.truncf %27 : vector<10x128xf32> to vector<10x128xbf16>
    %c0_13 = arith.constant 0 : index
    %c0_14 = arith.constant 0 : index
    %29 = vector.load %arg16[%c0_13, %c0_14] : memref<10x256xbf16, #tpu.memory_space<vmem>>, vector<10x128xbf16>
    tpu.vector_store %arg16[%c0_13, %c0_14], %28 {strides = array<i32>} : memref<10x256xbf16, #tpu.memory_space<vmem>>, vector<10x128xbf16>,
    %30 = vector.extract_strided_slice %9 {offsets = [0, 128], sizes = [10, 128], strides = [1, 1]} : vector<10x768xbf16> to vector<10x128xbf16>
    %31 = vector.extract_strided_slice %9 {offsets = [0, 384], sizes = [10, 128], strides = [1, 1]} : vector<10x768xbf16> to vector<10x128xbf16>
    %32 = vector.extract_strided_slice %9 {offsets = [0, 640], sizes = [10, 128], strides = [1, 1]} : vector<10x768xbf16> to vector<10x128xbf16>
    %cst_15 = arith.constant dense<0.000000e+00> : vector<10x10xf32>
    %33 = tpu.matmul %30, %31, %cst_15 {dimension_numbers = #tpu.dot_dimension_numbers<[1], [1], [0], [0], [0, 0, 1, 0], [], []>} : vector<10x128xbf16>, vector<10x128xbf16>, vector<10x10xf32> -> vector<10x10xf32>
    %34 = vector.broadcast %3 : vector<1x10xf32> to vector<10x10xf32>
    %35 = arith.addf %33, %34 : vector<10x10xf32>
    %cst_16 = arith.constant dense<0xFF800000> : vector<10xf32>
    %36 = vector.multi_reduction <maximumf>, %35, %cst_16 [1] : vector<10x10xf32> to vector<10xf32>
    %37 = vector.shape_cast %36 : vector<10xf32> to vector<10x1xf32>
    %38 = vector.broadcast %37 : vector<10x1xf32> to vector<10x10xf32>
    %39 = arith.subf %35, %38 : vector<10x10xf32>
    %40 = math.exp %39 : vector<10x10xf32>
    %cst_17 = arith.constant dense<0.000000e+00> : vector<10xf32>
    %41 = vector.multi_reduction <add>, %40, %cst_17 [1] : vector<10x10xf32> to vector<10xf32>
    %42 = vector.shape_cast %41 : vector<10xf32> to vector<10x1xf32>
    %43 = tpu.reciprocal %42 : vector<10x1xf32> -> vector<10x1xf32>
    %44 = vector.broadcast %43 : vector<10x1xf32> to vector<10x10xf32>
    %45 = arith.mulf %40, %44 : vector<10x10xf32>
    %46 = arith.truncf %45 : vector<10x10xf32> to vector<10x10xbf16>
    %cst_18 = arith.constant dense<0.000000e+00> : vector<10x128xf32>
    %47 = tpu.matmul %46, %32, %cst_18 {dimension_numbers = #tpu.dot_dimension_numbers<[1], [0], [0], [1], [0, 0, 1, 1], [], []>} : vector<10x10xbf16>, vector<10x128xbf16>, vector<10x128xf32> -> vector<10x128xf32>
    %48 = arith.truncf %47 : vector<10x128xf32> to vector<10x128xbf16>
    %c0_19 = arith.constant 0 : index
    %c128 = arith.constant 128 : index
    %49 = vector.load %arg16[%c0_19, %c128] : memref<10x256xbf16, #tpu.memory_space<vmem>>, vector<10x128xbf16>
    tpu.vector_store %arg16[%c0_19, %c128], %48 {strides = array<i32>} : memref<10x256xbf16, #tpu.memory_space<vmem>>, vector<10x128xbf16>,
    %c0_20 = arith.constant 0 : index
    %c0_21 = arith.constant 0 : index
    %50 = vector.load %arg16[%c0_20, %c0_21] : memref<10x256xbf16, #tpu.memory_space<vmem>>, vector<10x256xbf16>
    %c0_22 = arith.constant 0 : index
    %c0_23 = arith.constant 0 : index
    %51 = vector.load %arg5[%c0_22, %c0_23] : memref<256x64xbf16, #tpu.memory_space<vmem>>, vector<256x64xbf16>
    %cst_24 = arith.constant dense<0.000000e+00> : vector<10x64xf32>
    %52 = tpu.matmul %50, %51, %cst_24 {dimension_numbers = #tpu.dot_dimension_numbers<[1], [0], [0], [1], [0, 0, 1, 1], [], []>} : vector<10x256xbf16>, vector<256x64xbf16>, vector<10x64xf32> -> vector<10x64xf32>
    %c0_25 = arith.constant 0 : index
    %c0_26 = arith.constant 0 : index
    %53 = vector.load %arg6[%c0_25, %c0_26] : memref<1x64xf32, #tpu.memory_space<vmem>>, vector<1x64xf32>
    %54 = vector.broadcast %53 : vector<1x64xf32> to vector<10x64xf32>
    %55 = arith.addf %52, %54 : vector<10x64xf32>
    %56 = arith.extf %1 : vector<10x64xbf16> to vector<10x64xf32>
    %57 = arith.addf %55, %56 : vector<10x64xf32>
    %c0_27 = arith.constant 0 : index
    %c0_28 = arith.constant 0 : index
    %58 = vector.load %arg7[%c0_27, %c0_28] : memref<1x64xf32, #tpu.memory_space<vmem>>, vector<1x64xf32>
    %c0_29 = arith.constant 0 : index
    %c0_30 = arith.constant 0 : index
    %59 = vector.load %arg8[%c0_29, %c0_30] : memref<1x64xf32, #tpu.memory_space<vmem>>, vector<1x64xf32>
    %cst_31 = arith.constant dense<0.000000e+00> : vector<10xf32>
    %60 = vector.multi_reduction <add>, %57, %cst_31 [1] : vector<10x64xf32> to vector<10xf32>
    %61 = vector.shape_cast %60 : vector<10xf32> to vector<10x1xf32>
    %cst_32 = arith.constant 6.400000e+01 : f32
    %62 = vector.broadcast %cst_32 : f32 to vector<10x1xf32>
    %63 = arith.divf %61, %62 : vector<10x1xf32>
    %64 = vector.broadcast %63 : vector<10x1xf32> to vector<10x64xf32>
    %65 = arith.subf %57, %64 : vector<10x64xf32>
    %66 = arith.mulf %65, %65 : vector<10x64xf32>
    %cst_33 = arith.constant dense<0.000000e+00> : vector<10xf32>
    %67 = vector.multi_reduction <add>, %66, %cst_33 [1] : vector<10x64xf32> to vector<10xf32>
    %68 = vector.shape_cast %67 : vector<10xf32> to vector<10x1xf32>
    %cst_34 = arith.constant 6.400000e+01 : f32
    %69 = vector.broadcast %cst_34 : f32 to vector<10x1xf32>
    %70 = arith.divf %68, %69 : vector<10x1xf32>
    %71 = vector.broadcast %63 : vector<10x1xf32> to vector<10x64xf32>
    %72 = arith.subf %57, %71 : vector<10x64xf32>
    %cst_35 = arith.constant 9.99999996E-13 : f32
    %73 = vector.broadcast %cst_35 : f32 to vector<10x1xf32>
    %74 = arith.addf %70, %73 : vector<10x1xf32>
    %75 = math.rsqrt %74 : vector<10x1xf32>
    %76 = vector.broadcast %75 : vector<10x1xf32> to vector<10x64xf32>
    %77 = arith.mulf %72, %76 : vector<10x64xf32>
    %78 = vector.broadcast %58 : vector<1x64xf32> to vector<10x64xf32>
    %79 = arith.mulf %77, %78 : vector<10x64xf32>
    %80 = vector.broadcast %59 : vector<1x64xf32> to vector<10x64xf32>
    %81 = arith.addf %79, %80 : vector<10x64xf32>
    %82 = arith.truncf %81 : vector<10x64xf32> to vector<10x64xbf16>
    %cst_36 = arith.constant 0.000000e+00 : f32
    %83 = vector.broadcast %cst_36 : f32 to vector<10x64xf32>
    %c0_37 = arith.constant 0 : index
    %c0_38 = arith.constant 0 : index
    %84 = vector.load %arg9[%c0_37, %c0_38] : memref<64x128xbf16, #tpu.memory_space<vmem>>, vector<64x128xbf16>
    %cst_39 = arith.constant dense<0.000000e+00> : vector<10x128xf32>
    %85 = tpu.matmul %82, %84, %cst_39 {dimension_numbers = #tpu.dot_dimension_numbers<[1], [0], [0], [1], [0, 0, 1, 1], [], []>} : vector<10x64xbf16>, vector<64x128xbf16>, vector<10x128xf32> -> vector<10x128xf32>
    %c0_40 = arith.constant 0 : index
    %c0_41 = arith.constant 0 : index
    %86 = vector.load %arg10[%c0_40, %c0_41] : memref<1x128xf32, #tpu.memory_space<vmem>>, vector<1x128xf32>
    %87 = vector.broadcast %86 : vector<1x128xf32> to vector<10x128xf32>
    %88 = arith.addf %85, %87 : vector<10x128xf32>
    %cst_42 = arith.constant 5.000000e-01 : f32
    %89 = vector.broadcast %cst_42 : f32 to vector<10x128xf32>
    %90 = arith.mulf %89, %88 : vector<10x128xf32>
    %cst_43 = arith.constant 4.471500e-02 : f32
    %91 = vector.broadcast %cst_43 : f32 to vector<10x128xf32>
    %92 = arith.mulf %91, %88 : vector<10x128xf32>
    %93 = arith.mulf %92, %88 : vector<10x128xf32>
    %94 = arith.mulf %93, %88 : vector<10x128xf32>
    %95 = arith.addf %88, %94 : vector<10x128xf32>
    %cst_44 = arith.constant 0.797884583 : f32
    %96 = vector.broadcast %cst_44 : f32 to vector<10x128xf32>
    %97 = arith.mulf %96, %95 : vector<10x128xf32>
    %98 = math.tanh %97 : vector<10x128xf32>
    %cst_45 = arith.constant 1.000000e+00 : f32
    %99 = vector.broadcast %cst_45 : f32 to vector<10x128xf32>
    %100 = arith.addf %99, %98 : vector<10x128xf32>
    %101 = arith.mulf %90, %100 : vector<10x128xf32>
    %102 = arith.truncf %101 : vector<10x128xf32> to vector<10x128xbf16>
    %c0_46 = arith.constant 0 : index
    %c0_47 = arith.constant 0 : index
    %103 = vector.load %arg11[%c0_46, %c0_47] : memref<128x64xbf16, #tpu.memory_space<vmem>>, vector<128x64xbf16>
    %cst_48 = arith.constant dense<0.000000e+00> : vector<10x64xf32>
    %104 = tpu.matmul %102, %103, %cst_48 {dimension_numbers = #tpu.dot_dimension_numbers<[1], [0], [0], [1], [0, 0, 1, 1], [], []>} : vector<10x128xbf16>, vector<128x64xbf16>, vector<10x64xf32> -> vector<10x64xf32>
    %105 = arith.addf %83, %104 : vector<10x64xf32>
    %c0_49 = arith.constant 0 : index
    %c0_50 = arith.constant 0 : index
    %106 = vector.load %arg12[%c0_49, %c0_50] : memref<1x64xf32, #tpu.memory_space<vmem>>, vector<1x64xf32>
    %107 = vector.broadcast %106 : vector<1x64xf32> to vector<10x64xf32>
    %108 = arith.addf %105, %107 : vector<10x64xf32>
    %109 = arith.addf %108, %81 : vector<10x64xf32>
    %c0_51 = arith.constant 0 : index
    %c0_52 = arith.constant 0 : index
    %110 = vector.load %arg13[%c0_51, %c0_52] : memref<1x64xf32, #tpu.memory_space<vmem>>, vector<1x64xf32>
    %c0_53 = arith.constant 0 : index
    %c0_54 = arith.constant 0 : index
    %111 = vector.load %arg14[%c0_53, %c0_54] : memref<1x64xf32, #tpu.memory_space<vmem>>, vector<1x64xf32>
    %cst_55 = arith.constant dense<0.000000e+00> : vector<10xf32>
    %112 = vector.multi_reduction <add>, %109, %cst_55 [1] : vector<10x64xf32> to vector<10xf32>
    %113 = vector.shape_cast %112 : vector<10xf32> to vector<10x1xf32>
    %cst_56 = arith.constant 6.400000e+01 : f32
    %114 = vector.broadcast %cst_56 : f32 to vector<10x1xf32>
    %115 = arith.divf %113, %114 : vector<10x1xf32>
    %116 = vector.broadcast %115 : vector<10x1xf32> to vector<10x64xf32>
    %117 = arith.subf %109, %116 : vector<10x64xf32>
    %118 = arith.mulf %117, %117 : vector<10x64xf32>
    %cst_57 = arith.constant dense<0.000000e+00> : vector<10xf32>
    %119 = vector.multi_reduction <add>, %118, %cst_57 [1] : vector<10x64xf32> to vector<10xf32>
    %120 = vector.shape_cast %119 : vector<10xf32> to vector<10x1xf32>
    %cst_58 = arith.constant 6.400000e+01 : f32
    %121 = vector.broadcast %cst_58 : f32 to vector<10x1xf32>
    %122 = arith.divf %120, %121 : vector<10x1xf32>
    %123 = vector.broadcast %115 : vector<10x1xf32> to vector<10x64xf32>
    %124 = arith.subf %109, %123 : vector<10x64xf32>
    %cst_59 = arith.constant 9.99999996E-13 : f32
    %125 = vector.broadcast %cst_59 : f32 to vector<10x1xf32>
    %126 = arith.addf %122, %125 : vector<10x1xf32>
    %127 = math.rsqrt %126 : vector<10x1xf32>
    %128 = vector.broadcast %127 : vector<10x1xf32> to vector<10x64xf32>
    %129 = arith.mulf %124, %128 : vector<10x64xf32>
    %130 = vector.broadcast %110 : vector<1x64xf32> to vector<10x64xf32>
    %131 = arith.mulf %129, %130 : vector<10x64xf32>
    %132 = vector.broadcast %111 : vector<1x64xf32> to vector<10x64xf32>
    %133 = arith.addf %131, %132 : vector<10x64xf32>
    %134 = arith.truncf %133 : vector<10x64xf32> to vector<10x64xbf16>
    %c0_60 = arith.constant 0 : index
    %c0_61 = arith.constant 0 : index
    %c0_62 = arith.constant 0 : index
    %135 = vector.load %arg15[%c0_60, %c0_61, %c0_62] : memref<1x10x64xbf16, #tpu.memory_space<vmem>>, vector<1x10x64xbf16>
    %136 = vector.shape_cast %135 : vector<1x10x64xbf16> to vector<10x64xbf16>
    %137 = vector.shape_cast %134 : vector<10x64xbf16> to vector<1x10x64xbf16>
    tpu.vector_store %arg15[%c0_60, %c0_61, %c0_62], %137 {strides = array<i32>} : memref<1x10x64xbf16, #tpu.memory_space<vmem>>, vector<1x10x64xbf16>,
    return
  }
  func.func @transform_0(%arg0: i32) -> (i32, i32, i32) {
    %c0_i32 = arith.constant 0 : i32
    %c0_i32_0 = arith.constant 0 : i32
    %c0_i32_1 = arith.constant 0 : i32
    return %arg0, %c0_i32, %c0_i32_0 : i32, i32, i32
  }
  func.func @transform_1(%arg0: i32) -> (i32, i32, i32) {
    %c0_i32 = arith.constant 0 : i32
    %c0_i32_0 = arith.constant 0 : i32
    %c0_i32_1 = arith.constant 0 : i32
    return %arg0, %c0_i32, %c0_i32_0 : i32, i32, i32
  }
  func.func @transform_2(%arg0: i32) -> (i32, i32) {
    %c0_i32 = arith.constant 0 : i32
    %c0_i32_0 = arith.constant 0 : i32
    %c0_i32_1 = arith.constant 0 : i32
    return %c0_i32, %c0_i32_0 : i32, i32
  }
  func.func @transform_3(%arg0: i32) -> (i32, i32) {
    %c0_i32 = arith.constant 0 : i32
    %c0_i32_0 = arith.constant 0 : i32
    %c0_i32_1 = arith.constant 0 : i32
    return %c0_i32, %c0_i32_0 : i32, i32
  }
  func.func @transform_4(%arg0: i32) -> (i32, i32) {
    %c0_i32 = arith.constant 0 : i32
    %c0_i32_0 = arith.constant 0 : i32
    %c0_i32_1 = arith.constant 0 : i32
    return %c0_i32, %c0_i32_0 : i32, i32
  }
  func.func @transform_5(%arg0: i32) -> (i32, i32) {
    %c0_i32 = arith.constant 0 : i32
    %c0_i32_0 = arith.constant 0 : i32
    %c0_i32_1 = arith.constant 0 : i32
    return %c0_i32, %c0_i32_0 : i32, i32
  }
  func.func @transform_6(%arg0: i32) -> (i32, i32) {
    %c0_i32 = arith.constant 0 : i32
    %c0_i32_0 = arith.constant 0 : i32
    %c0_i32_1 = arith.constant 0 : i32
    return %c0_i32, %c0_i32_0 : i32, i32
  }
  func.func @transform_7(%arg0: i32) -> (i32, i32) {
    %c0_i32 = arith.constant 0 : i32
    %c0_i32_0 = arith.constant 0 : i32
    %c0_i32_1 = arith.constant 0 : i32
    return %c0_i32, %c0_i32_0 : i32, i32
  }
  func.func @transform_8(%arg0: i32) -> (i32, i32) {
    %c0_i32 = arith.constant 0 : i32
    %c0_i32_0 = arith.constant 0 : i32
    %c0_i32_1 = arith.constant 0 : i32
    return %c0_i32, %c0_i32_0 : i32, i32
  }
  func.func @transform_9(%arg0: i32) -> (i32, i32) {
    %c0_i32 = arith.constant 0 : i32
    %c0_i32_0 = arith.constant 0 : i32
    %c0_i32_1 = arith.constant 0 : i32
    return %c0_i32, %c0_i32_0 : i32, i32
  }
  func.func @transform_10(%arg0: i32) -> (i32, i32) {
    %c0_i32 = arith.constant 0 : i32
    %c0_i32_0 = arith.constant 0 : i32
    %c0_i32_1 = arith.constant 0 : i32
    return %c0_i32, %c0_i32_0 : i32, i32
  }
  func.func @transform_11(%arg0: i32) -> (i32, i32) {
    %c0_i32 = arith.constant 0 : i32
    %c0_i32_0 = arith.constant 0 : i32
    %c0_i32_1 = arith.constant 0 : i32
    return %c0_i32, %c0_i32_0 : i32, i32
  }
  func.func @transform_12(%arg0: i32) -> (i32, i32) {
    %c0_i32 = arith.constant 0 : i32
    %c0_i32_0 = arith.constant 0 : i32
    %c0_i32_1 = arith.constant 0 : i32
    return %c0_i32, %c0_i32_0 : i32, i32
  }
  func.func @transform_13(%arg0: i32) -> (i32, i32) {
    %c0_i32 = arith.constant 0 : i32
    %c0_i32_0 = arith.constant 0 : i32
    %c0_i32_1 = arith.constant 0 : i32
    return %c0_i32, %c0_i32_0 : i32, i32
  }
  func.func @transform_14(%arg0: i32) -> (i32, i32, i32) {
    %c0_i32 = arith.constant 0 : i32
    %c0_i32_0 = arith.constant 0 : i32
    %c0_i32_1 = arith.constant 0 : i32
    return %arg0, %c0_i32, %c0_i32_0 : i32, i32, i32
  }
}

</mosaic_0001>

<llo_original>
// kernel: tpu_custom_call.1
$region0: #{tpu_custom_call.1}
  #allocation0 [shape = 'u32[]', space=smem, size = 0x4, offset = 0x4, fixed_abs, tag = 'smem constant byte address 0x4 - core index']
  #allocation1 [shape = 'u32[72,128]{1,0:T(1,128)}', space=vmem, size = 0x9000, scoped, tag = 'internal scratch']
  %s0 = inlined_call_operand.hbm [shape: f32[8,128], index: 0, kind: input, shape index: {}]
  %s1 = inlined_call_operand.hbm [shape: f32[8,128], index: 1, kind: output, shape index: {}]
  %s2 = sld [smem:[#allocation0]]
  $region41: #{tpu_custom_call.1} parent=0
    _
  %s4 = ssub.s32 1, %s2
  %s5 = scalar_select 0, %s4, %s2
  $region1: #{tpu_custom_call.1} parent=0
    #allocation2 [shape = 'u8[4096]{0}', space=vmem, size = 0x1000, scoped, tag = 'input window, operand 0, single buffered']
    #allocation3 [shape = 's32[2]{0}', space=sflag, size = 0x8, scoped, tag = 'scoped memory for tpu_custom_call.1']
    #allocation4 [shape = 's32[2]{0}', space=sflag, size = 0x8, scoped, tag = 'scoped memory for tpu_custom_call.1']
    #allocation5 [shape = 'u8[4096]{0}', space=vmem, size = 0x1000, scoped, tag = 'output window, operand 0, single buffered']
    %6 = vsyncpa [#allocation3], 0
    %7 = vsyncpa [#allocation4], 0
    loop: start=0, step=1, limit=4
    $region2: #{tpu_custom_call.1} parent=1 // loop_pre_header
      _
    $region3: #{tpu_custom_call.1} parent=1 // loop_header
      %s9 = sphi 0, %s13
      %p10 = scmp.ge.s32.totalorder %s9, 4
      %s17 = sphi 0, %s17
      %s19 = sphi 0, %s17
      %s20 = sphi 0, %s19
      %s34 = sphi 0, %s20
      %s38 = sphi 0, %s38
      %s40 = sphi 0, %s38
      %s41 = sphi 0, %s40
      %s55 = sphi 0, %s41
    $region4: #{tpu_custom_call.1} parent=1 // loop_header_branch
      %12 = sbr.rel (%p10) target = $region8
    $region5: #{tpu_custom_call.1} parent=1 // loop_body
      %s14 = ssub.s32 %s9, 1
      %s15 = ssub.s32 %s9, 2
      %s16 = sadd.s32 %s9, 1
      %s18 = sadd.s32 %s17, 1
      %p21 = scmp.eq.s32.totalorder %s9, 1
      %p22 = scmp.ne.s32.totalorder %s17, %s19
      %p23 = scmp.eq.s32.totalorder %s9, 0
      %p24 = por %p22, %p23
      %p25 = scmp.ne.s32.totalorder %s17, %s19
      %p26 = scmp.eq.s32.totalorder %s14, 1
      %p27 = por %p25, %p26
      %p28 = scmp.ne.s32.totalorder %s19, %s20
      %p29 = scmp.eq.s32.totalorder %s14, 0
      %p30 = por %p28, %p29
      %p31 = scmp.ne.s32.totalorder %s19, %s20
      %p32 = scmp.eq.s32.totalorder %s15, 1
      %p33 = por %p31, %p32
      %p35 = scmp.ne.s32.totalorder %s20, %s34
      %p36 = scmp.eq.s32.totalorder %s15, 0
      %p37 = por %p35, %p36
      %s39 = sadd.s32 %s38, 1
      %p42 = scmp.eq.s32.totalorder %s9, 1
      %p43 = scmp.ne.s32.totalorder %s38, %s40
      %p44 = scmp.eq.s32.totalorder %s9, 0
      %p45 = por %p43, %p44
      %p46 = scmp.ne.s32.totalorder %s38, %s40
      %p47 = scmp.eq.s32.totalorder %s14, 1
      %p48 = por %p46, %p47
      %p49 = scmp.ne.s32.totalorder %s40, %s41
      %p50 = scmp.eq.s32.totalorder %s14, 0
      %p51 = por %p49, %p50
      %p52 = scmp.ne.s32.totalorder %s40, %s41
      %p53 = scmp.eq.s32.totalorder %s15, 1
      %p54 = por %p52, %p53
      %p56 = scmp.ne.s32.totalorder %s41, %s55
      %p57 = scmp.eq.s32.totalorder %s15, 0
      %p58 = por %p56, %p57
      %p59 = scmp.le.s32.totalorder 1, %s9
      %p60 = scmp.lt.s32.totalorder %s9, 3
      %p61 = pnand %p59, %p60
      %p62 = pneg %p61
      // Predicated region
      $region9: #{tpu_custom_call.1} parent=5 // pred_check
        _
      $region10: #{tpu_custom_call.1} parent=5 // pred_check_branch
        %64 = sbr.rel (%p61) target = $region12
      $region11: #{tpu_custom_call.1} parent=5 // pred_region
        %s65 = ssub.s32 %s9, 1
        // Predicated region
        $region13: #{tpu_custom_call.1} parent=11 // pred_check
          %p66 = pneg %p30
        $region14: #{tpu_custom_call.1} parent=11 // pred_check_branch
          %68 = sbr.rel (%p66) target = $region16
        $region15: #{tpu_custom_call.1} parent=11 // pred_region
          %70 = vsyncadd [#allocation3], 0
          %s72 = sshll.u32 %s0, 4
          %s73 = int_to_ptr.hbm [resolvable:$true] %s72
          %s74 = sshll.u32 [#allocation2], 4
          %s75 = int_to_ptr.vmem [resolvable:$true] %s74
          %77 = dma.hbm_to_vmem [thread:$0]  %s73, 128, %s75, [#allocation3]
        $region16: #{tpu_custom_call.1} parent=11 // pred_fallthru
          _
      $region12: #{tpu_custom_call.1} parent=5 // pred_fallthru
        _
      %p78 = scmp.lt.s32.totalorder %s9, 2
      // Predicated region
      $region17: #{tpu_custom_call.1} parent=5 // pred_check
        %p79 = pneg %p78
      $region18: #{tpu_custom_call.1} parent=5 // pred_check_branch
        %81 = sbr.rel (%p79) target = $region20
      $region19: #{tpu_custom_call.1} parent=5 // pred_region
        _
      $region20: #{tpu_custom_call.1} parent=5 // pred_fallthru
        _
      %p82 = scmp.le.s32.totalorder 1, %s9
      %p83 = scmp.lt.s32.totalorder %s9, 3
      %p84 = pnand %p82, %p83
      %p85 = pneg %p84
      // Predicated region
      $region21: #{tpu_custom_call.1} parent=5 // pred_check
        _
      $region22: #{tpu_custom_call.1} parent=5 // pred_check_branch
        %87 = sbr.rel (%p84) target = $region24
      $region23: #{tpu_custom_call.1} parent=5 // pred_region
        %s88 = ssub.s32 %s9, 1
        // Predicated region
        $region25: #{tpu_custom_call.1} parent=23 // pred_check
          %p89 = pneg %p30
        $region26: #{tpu_custom_call.1} parent=23 // pred_check_branch
          %91 = sbr.rel (%p89) target = $region28
        $region27: #{tpu_custom_call.1} parent=23 // pred_region
          %93 = dma.done [#allocation3], 128
        $region28: #{tpu_custom_call.1} parent=23 // pred_fallthru
          _
        %p94 = pneg %p30
        %p95 = pneg %p27
        %p96 = pneg %p51
        %p97 = pneg %p48
        %v98 = vld [vmem:[#allocation2] sm:$0xff]
        %v99 = vadd.f32 %v98, 1.0
        %100 = vst [vmem:[#allocation5] sm:$0xff] %v99
        // Predicated region
        $region29: #{tpu_custom_call.1} parent=23 // pred_check
          %p101 = pneg %p48
        $region30: #{tpu_custom_call.1} parent=23 // pred_check_branch
          %103 = sbr.rel (%p101) target = $region32
        $region31: #{tpu_custom_call.1} parent=23 // pred_region
          %105 = vsyncadd [#allocation4], 0
          %s107 = sshll.u32 [#allocation5], 4
          %s108 = int_to_ptr.vmem [resolvable:$true] %s107
          %s109 = sshll.u32 %s1, 4
          %s110 = int_to_ptr.hbm [resolvable:$true] %s109
          %112 = dma.vmem_to_hbm [thread:$0]  %s108, 128, %s110, [#allocation4]
        $region32: #{tpu_custom_call.1} parent=23 // pred_fallthru
          _
        // Predicated region
        $region33: #{tpu_custom_call.1} parent=23 // pred_check
          %p113 = pneg %p48
        $region34: #{tpu_custom_call.1} parent=23 // pred_check_branch
          %115 = sbr.rel (%p113) target = $region36
        $region35: #{tpu_custom_call.1} parent=23 // pred_region
          %117 = dma.done [#allocation4], 128
        $region36: #{tpu_custom_call.1} parent=23 // pred_fallthru
          _
      $region24: #{tpu_custom_call.1} parent=5 // pred_fallthru
        _
      %p118 = scmp.le.s32.totalorder 2, %s9
      // Predicated region
      $region37: #{tpu_custom_call.1} parent=5 // pred_check
        %p119 = pneg %p118
      $region38: #{tpu_custom_call.1} parent=5 // pred_check_branch
        %121 = sbr.rel (%p119) target = $region40
      $region39: #{tpu_custom_call.1} parent=5 // pred_region
        %s122 = ssub.s32 %s9, 2
      $region40: #{tpu_custom_call.1} parent=5 // pred_fallthru
        _
    $region6: #{tpu_custom_call.1} parent=1 // loop_footer
      %s13 = sadd.s32 1, %s9
    $region7: #{tpu_custom_call.1} parent=1 // loop_footer_branch
      %8 = sbr.rel target = $region3
    $region8: #{tpu_custom_call.1} parent=1 // loop_exit
      _
    %123 = vsyncpa [#allocation3], 1
    %s124 = scalar_lea.sflag [#allocation3], 1
    %125 = vsyncpa %s124, 1
    %126 = vsyncpa [#allocation4], 1
    %s127 = scalar_lea.sflag [#allocation4], 1
    %128 = vsyncpa %s127, 1

// kernel: encoder_forward.3
$region0: #{encoder_forward.3}
  #allocation0 [shape = 'u32[]', space=smem, size = 0x4, offset = 0x4, fixed_abs, tag = 'smem constant byte address 0x4 - core index']
  #allocation1 [shape = 'u32[72,128]{1,0:T(1,128)}', space=vmem, size = 0x9000, scoped, tag = 'internal scratch']
  %s0 = inlined_call_operand.vmem [shape: bf16[2,10,64], index: 0, kind: input, shape index: {}]
  %s1 = inlined_call_operand.vmem [shape: f32[1,64], index: 1, kind: input, shape index: {}]
  %s2 = inlined_call_operand.vmem [shape: f32[1,64], index: 2, kind: input, shape index: {}]
  %s3 = inlined_call_operand.vmem [shape: bf16[2,10,64], index: 3, kind: output, shape index: {}]
  %s4 = sld [smem:[#allocation0]]
  $region45: #{encoder_forward.3} parent=0
    _
  %s6 = ssub.s32 1, %s4
  %s7 = scalar_select 0, %s6, %s4
  loop: start=0, step=1, limit=4
  $region2: #{encoder_forward.3} parent=0 // loop_pre_header
    _
  $region3: #{encoder_forward.3} parent=0 // loop_header
    %s9 = sphi 0, %s13
    %p10 = scmp.ge.s32.totalorder %s9, 4
    %s19 = sphi 0, %s21
    %s22 = sphi 0, %s19
    %s23 = sphi 0, %s22
    %s39 = sphi 0, %s23
    %s43 = sphi 0, %s43
    %s45 = sphi 0, %s43
    %s46 = sphi 0, %s45
    %s60 = sphi 0, %s46
    %s64 = sphi 0, %s64
    %s66 = sphi 0, %s64
    %s67 = sphi 0, %s66
    %s81 = sphi 0, %s67
    %s87 = sphi 0, %s89
    %s90 = sphi 0, %s87
    %s91 = sphi 0, %s90
    %s107 = sphi 0, %s91
  $region4: #{encoder_forward.3} parent=0 // loop_header_branch
    %12 = sbr.rel (%p10) target = $region8
  $region5: #{encoder_forward.3} parent=0 // loop_body
    %s14 = ssub.s32 %s9, 1
    %s15 = ssub.s32 %s9, 2
    %s16 = sadd.s32 %s9, 1
    %s17 = ssub.s32 %s9, %s16
    %p18 = scmp.eq.s32.totalorder %s17, 0
    %s20 = sadd.s32 %s19, 1
    %s21 = scalar_select %p18, %s19, %s20
    %p24 = pneg %p18
    %p25 = scmp.eq.s32.totalorder %s9, 1
    %p26 = por %p24, %p25
    %p27 = scmp.ne.s32.totalorder %s19, %s22
    %p28 = scmp.eq.s32.totalorder %s9, 0
    %p29 = por %p27, %p28
    %p30 = scmp.ne.s32.totalorder %s19, %s22
    %p31 = scmp.eq.s32.totalorder %s14, 1
    %p32 = por %p30, %p31
    %p33 = scmp.ne.s32.totalorder %s22, %s23
    %p34 = scmp.eq.s32.totalorder %s14, 0
    %p35 = por %p33, %p34
    %p36 = scmp.ne.s32.totalorder %s22, %s23
    %p37 = scmp.eq.s32.totalorder %s15, 1
    %p38 = por %p36, %p37
    %p40 = scmp.ne.s32.totalorder %s23, %s39
    %p41 = scmp.eq.s32.totalorder %s15, 0
    %p42 = por %p40, %p41
    %s44 = sadd.s32 %s43, 1
    %p47 = scmp.eq.s32.totalorder %s9, 1
    %p48 = scmp.ne.s32.totalorder %s43, %s45
    %p49 = scmp.eq.s32.totalorder %s9, 0
    %p50 = por %p48, %p49
    %p51 = scmp.ne.s32.totalorder %s43, %s45
    %p52 = scmp.eq.s32.totalorder %s14, 1
    %p53 = por %p51, %p52
    %p54 = scmp.ne.s32.totalorder %s45, %s46
    %p55 = scmp.eq.s32.totalorder %s14, 0
    %p56 = por %p54, %p55
    %p57 = scmp.ne.s32.totalorder %s45, %s46
    %p58 = scmp.eq.s32.totalorder %s15, 1
    %p59 = por %p57, %p58
    %p61 = scmp.ne.s32.totalorder %s46, %s60
    %p62 = scmp.eq.s32.totalorder %s15, 0
    %p63 = por %p61, %p62
    %s65 = sadd.s32 %s64, 1
    %p68 = scmp.eq.s32.totalorder %s9, 1
    %p69 = scmp.ne.s32.totalorder %s64, %s66
    %p70 = scmp.eq.s32.totalorder %s9, 0
    %p71 = por %p69, %p70
    %p72 = scmp.ne.s32.totalorder %s64, %s66
    %p73 = scmp.eq.s32.totalorder %s14, 1
    %p74 = por %p72, %p73
    %p75 = scmp.ne.s32.totalorder %s66, %s67
    %p76 = scmp.eq.s32.totalorder %s14, 0
    %p77 = por %p75, %p76
    %p78 = scmp.ne.s32.totalorder %s66, %s67
    %p79 = scmp.eq.s32.totalorder %s15, 1
    %p80 = por %p78, %p79
    %p82 = scmp.ne.s32.totalorder %s67, %s81
    %p83 = scmp.eq.s32.totalorder %s15, 0
    %p84 = por %p82, %p83
    %s85 = ssub.s32 %s9, %s16
    %p86 = scmp.eq.s32.totalorder %s85, 0
    %s88 = sadd.s32 %s87, 1
    %s89 = scalar_select %p86, %s87, %s88
    %p92 = pneg %p86
    %p93 = scmp.eq.s32.totalorder %s9, 1
    %p94 = por %p92, %p93
    %p95 = scmp.ne.s32.totalorder %s87, %s90
    %p96 = scmp.eq.s32.totalorder %s9, 0
    %p97 = por %p95, %p96
    %p98 = scmp.ne.s32.totalorder %s87, %s90
    %p99 = scmp.eq.s32.totalorder %s14, 1
    %p100 = por %p98, %p99
    %p101 = scmp.ne.s32.totalorder %s90, %s91
    %p102 = scmp.eq.s32.totalorder %s14, 0
    %p103 = por %p101, %p102
    %p104 = scmp.ne.s32.totalorder %s90, %s91
    %p105 = scmp.eq.s32.totalorder %s15, 1
    %p106 = por %p104, %p105
    %p108 = scmp.ne.s32.totalorder %s91, %s107
    %p109 = scmp.eq.s32.totalorder %s15, 0
    %p110 = por %p108, %p109
    %p111 = scmp.le.s32.totalorder 1, %s9
    %p112 = scmp.lt.s32.totalorder %s9, 3
    %p113 = pnand %p111, %p112
    %p114 = pneg %p113
    // Predicated region
    $region9: #{encoder_forward.3} parent=5 // pred_check
      _
    $region10: #{encoder_forward.3} parent=5 // pred_check_branch
      %116 = sbr.rel (%p113) target = $region12
    $region11: #{encoder_forward.3} parent=5 // pred_region
      %s117 = ssub.s32 %s9, 1
      // Predicated region
      $region13: #{encoder_forward.3} parent=11 // pred_check
        %p118 = pneg %p56
      $region14: #{encoder_forward.3} parent=11 // pred_check_branch
        %120 = sbr.rel (%p118) target = $region16
      $region15: #{encoder_forward.3} parent=11 // pred_region
        _
      $region16: #{encoder_forward.3} parent=11 // pred_fallthru
        _
      // Predicated region
      $region17: #{encoder_forward.3} parent=11 // pred_check
        %p121 = pneg %p77
      $region18: #{encoder_forward.3} parent=11 // pred_check_branch
        %123 = sbr.rel (%p121) target = $region20
      $region19: #{encoder_forward.3} parent=11 // pred_region
        _
      $region20: #{encoder_forward.3} parent=11 // pred_fallthru
        _
    $region12: #{encoder_forward.3} parent=5 // pred_fallthru
      _
    %p124 = scmp.lt.s32.totalorder %s9, 2
    // Predicated region
    $region21: #{encoder_forward.3} parent=5 // pred_check
      %p125 = pneg %p124
    $region22: #{encoder_forward.3} parent=5 // pred_check_branch
      %127 = sbr.rel (%p125) target = $region24
    $region23: #{encoder_forward.3} parent=5 // pred_region
      // Predicated region
      $region25: #{encoder_forward.3} parent=23 // pred_check
        %p128 = pneg %p29
      $region26: #{encoder_forward.3} parent=23 // pred_check_branch
        %130 = sbr.rel (%p128) target = $region28
      $region27: #{encoder_forward.3} parent=23 // pred_region
        %p131 = scmp.lt.s32.totalorder %s9, 1
        %s132 = scalar_select %p131, %s9, 1
        %s133 = smul.addr %s132, 2
        %s134 = smul.addr %s133, 4
        %s135 = scalar_lea.vmem %s0, %s134
      $region28: #{encoder_forward.3} parent=23 // pred_fallthru
        _
    $region24: #{encoder_forward.3} parent=5 // pred_fallthru
      _
    %p136 = scmp.le.s32.totalorder 1, %s9
    %p137 = scmp.lt.s32.totalorder %s9, 3
    %p138 = pnand %p136, %p137
    %p139 = pneg %p138
    // Predicated region
    $region29: #{encoder_forward.3} parent=5 // pred_check
      _
    $region30: #{encoder_forward.3} parent=5 // pred_check_branch
      %141 = sbr.rel (%p138) target = $region32
    $region31: #{encoder_forward.3} parent=5 // pred_region
      %s142 = ssub.s32 %s9, 1
      %p143 = scmp.lt.s32.totalorder %s14, 1
      %s144 = scalar_select %p143, %s14, 1
      %s145 = smul.addr %s144, 2
      %s146 = smul.addr %s145, 4
      %s147 = scalar_lea.vmem %s0, %s146
      %p148 = pneg %p35
      %p149 = pneg %p32
      %p150 = pneg %p56
      %p151 = pneg %p53
      %p152 = pneg %p77
      %p153 = pneg %p74
      %p154 = pneg %p103
      %p155 = pneg %p100
      %p156 = scmp.lt.s32.totalorder %s14, 1
      %s157 = scalar_select %p156, %s14, 1
      %s158 = smul.addr %s157, 2
      %s159 = smul.addr %s158, 4
      %s160 = scalar_lea.vmem %s3, %s159
      %p161 = scmp.lt.s32.totalorder %s14, 1
      %s162 = scalar_select %p161, %s14, 1
      %s163 = smul.addr %s162, 2
      %s164 = smul.addr %s163, 4
      %s165 = scalar_lea.vmem %s0, %s164
      %p166 = scmp.lt.s32.totalorder %s14, 1
      %s167 = scalar_select %p166, %s14, 1
      %s168 = smul.addr %s167, 2
      %s169 = smul.addr %s168, 4
      %s170 = scalar_lea.vmem %s3, %s169
      %v171 = vld [vmem:[%s165] sm:$0xf]
      %v172 = vld [vmem:[%s165 + $0x4] sm:$0x1]
      %v173 = vunpack.c.l.bf16 %v171
      %v174 = vunpack.c.l.bf16 %v172
      %v175 = vld [vmem:[%s1] sm:$0x1]
      %v176 = vld [vmem:[%s2] sm:$0x1]
      %vm177 = vcmask 523264
      %v178 = vsel %vm177, %v173, 0.0
      %179 = vadd.xlane.f32.xlu0 %v178
      %v180 = vpop.xlane.xlu0 %179
      %vm181 = vcmask 517120
      %v182 = vsel %vm181, %v174, 0.0
      %183 = vadd.xlane.f32.xlu0 %v182
      %v184 = vpop.xlane.xlu0 %183
      %v185 = vrcp.pop 64.0
      %v186 = vmul.f32 64.0, %v185
      %v187 = vsub.f32 1.0, %v186
      %v188 = vmul.f32 %v185, %v187
      %v189 = vadd.f32 %v185, %v188
      %vm190 = vweird.f32 %v185
      %v191 = vsel %vm190, %v185, %v189
      %v192 = vmul.f32 %v180, %v191
      %v193 = vmul.f32 %v184, %v191
      %v194 = vsub.f32 %v173, %v192
      %v195 = vsub.f32 %v174, %v193
      %v196 = vmul.f32 %v194, %v194
      %v197 = vmul.f32 %v195, %v195
      %v198 = vsel %vm177, %v196, 0.0
      %199 = vadd.xlane.f32.xlu0 %v198
      %v200 = vpop.xlane.xlu0 %199
      %v201 = vsel %vm181, %v197, 0.0
      %202 = vadd.xlane.f32.xlu0 %v201
      %v203 = vpop.xlane.xlu0 %202
      %v204 = vmul.f32 %v200, %v191
      %v205 = vmul.f32 %v203, %v191
      %v206 = vadd.f32 %v204, 1e-12
      %v207 = vadd.f32 %v205, 1e-12
      %v208 = vrsqrt.pop %v206
      %v209 = vmul.f32 %v208, %v206
      %v210 = vmul.f32 %v209, %v208
      %v211 = vmul.f32 0.5, %v210
      %v212 = vsub.f32 1.5, %v211
      %v213 = vmul.f32 %v208, %v212
      %vm214 = vweird.f32 %v206
      %vm215 = vweird.f32 %v208
      %vm216 = vmor %vm214, %vm215
      %v217 = vsel %vm216, %v208, %v213
      %v218 = vrsqrt.pop %v207
      %v219 = vmul.f32 %v218, %v207
      %v220 = vmul.f32 %v219, %v218
      %v221 = vmul.f32 0.5, %v220
      %v222 = vsub.f32 1.5, %v221
      %v223 = vmul.f32 %v218, %v222
      %vm224 = vweird.f32 %v207
      %vm225 = vweird.f32 %v218
      %vm226 = vmor %vm224, %vm225
      %v227 = vsel %vm226, %v218, %v223
      %v228 = vmul.f32 %v194, %v217
      %v229 = vmul.f32 %v195, %v227
      %v231 = vperm.slane %v175, 0
      %v233 = vmul.f32 %v228, %v231
      %v234 = vmul.f32 %v229, %v231
      %v236 = vperm.slane %v176, 0
      %v238 = vadd.f32 %v233, %v236
      %v239 = vadd.f32 %v234, %v236
      %v240 = vpack.c.bf16 %v238, %v238
      %v241 = vpack.c.bf16 %v239, %v239
      %vm242 = vcmask 519168
      %243 = vst.msk [vmem:[%s170] sm:$0xf] %vm242, %v240
      %vm244 = vcmask 516096
      %245 = vst.msk [vmem:[%s170 + $0x4] sm:$0x1] %vm244, %v241
      %p246 = scmp.lt.s32.totalorder %s14, 1
      %s247 = scalar_select %p246, %s14, 1
      %s248 = smul.addr %s247, 2
      %s249 = smul.addr %s248, 4
      %s250 = scalar_lea.vmem %s3, %s249
      // Predicated region
      $region33: #{encoder_forward.3} parent=31 // pred_check
        %p251 = pneg %p100
      $region34: #{encoder_forward.3} parent=31 // pred_check_branch
        %253 = sbr.rel (%p251) target = $region36
      $region35: #{encoder_forward.3} parent=31 // pred_region
        _
      $region36: #{encoder_forward.3} parent=31 // pred_fallthru
        _
    $region32: #{encoder_forward.3} parent=5 // pred_fallthru
      _
    %p254 = scmp.le.s32.totalorder 2, %s9
    // Predicated region
    $region37: #{encoder_forward.3} parent=5 // pred_check
      %p255 = pneg %p254
    $region38: #{encoder_forward.3} parent=5 // pred_check_branch
      %257 = sbr.rel (%p255) target = $region40
    $region39: #{encoder_forward.3} parent=5 // pred_region
      %s258 = ssub.s32 %s9, 2
      // Predicated region
      $region41: #{encoder_forward.3} parent=39 // pred_check
        %p259 = pneg %p106
      $region42: #{encoder_forward.3} parent=39 // pred_check_branch
        %261 = sbr.rel (%p259) target = $region44
      $region43: #{encoder_forward.3} parent=39 // pred_region
        %p262 = scmp.lt.s32.totalorder %s15, 1
        %s263 = scalar_select %p262, %s15, 1
        %s264 = smul.addr %s263, 2
        %s265 = smul.addr %s264, 4
        %s266 = scalar_lea.vmem %s3, %s265
      $region44: #{encoder_forward.3} parent=39 // pred_fallthru
        _
    $region40: #{encoder_forward.3} parent=5 // pred_fallthru
      _
  $region6: #{encoder_forward.3} parent=0 // loop_footer
    %s13 = sadd.s32 1, %s9
  $region7: #{encoder_forward.3} parent=0 // loop_footer_branch
    %8 = sbr.rel target = $region3
  $region8: #{encoder_forward.3} parent=0 // loop_exit
    _

// kernel: encoder_forward.4
$region0: #{encoder_forward.4}
  #allocation0 [shape = 'u32[]', space=smem, size = 0x4, offset = 0x4, fixed_abs, tag = 'smem constant byte address 0x4 - core index']
  #allocation1 [shape = 'u32[72,128]{1,0:T(1,128)}', space=vmem, size = 0x9000, scoped, tag = 'internal scratch']
  #allocation2 [shape = 'bf16[10,256]{1,0:T(8,128)(2,1)}', space=vmem, size = 0x2000, scoped, tag = 'scratch operand']
  %s0 = inlined_call_operand.vmem [shape: bf16[2,10,64], index: 0, kind: input, shape index: {}, may-alias: {0,14}]
  %s1 = inlined_call_operand.vmem [shape: f32[2,1,10], index: 1, kind: input, shape index: {}]
  %s2 = inlined_call_operand.vmem [shape: bf16[64,768], index: 2, kind: input, shape index: {}]
  %s3 = inlined_call_operand.vmem [shape: f32[1,768], index: 3, kind: input, shape index: {}]
  %s4 = inlined_call_operand.vmem [shape: bf16[256,64], index: 4, kind: input, shape index: {}]
  %s5 = inlined_call_operand.vmem [shape: f32[1,64], index: 5, kind: input, shape index: {}]
  %s6 = inlined_call_operand.vmem [shape: f32[1,64], index: 6, kind: input, shape index: {}]
  %s7 = inlined_call_operand.vmem [shape: f32[1,64], index: 7, kind: input, shape index: {}]
  %s8 = inlined_call_operand.vmem [shape: bf16[64,128], index: 8, kind: input, shape index: {}]
  %s9 = inlined_call_operand.vmem [shape: f32[1,128], index: 9, kind: input, shape index: {}]
  %s10 = inlined_call_operand.vmem [shape: bf16[128,64], index: 10, kind: input, shape index: {}]
  %s11 = inlined_call_operand.vmem [shape: f32[1,64], index: 11, kind: input, shape index: {}]
  %s12 = inlined_call_operand.vmem [shape: f32[1,64], index: 12, kind: input, shape index: {}]
  %s13 = inlined_call_operand.vmem [shape: f32[1,64], index: 13, kind: input, shape index: {}]
  %s14 = inlined_call_operand.vmem [shape: bf16[2,10,64], index: 14, kind: output, shape index: {}, may-alias: {0,14}]
  %s15 = sld [smem:[#allocation0]]
  $region89: #{encoder_forward.4} parent=0
    _
  %s17 = ssub.s32 1, %s15
  %s18 = scalar_select 0, %s17, %s15
  loop: start=0, step=1, limit=4
  $region2: #{encoder_forward.4} parent=0 // loop_pre_header
    _
  $region3: #{encoder_forward.4} parent=0 // loop_header
    %s20 = sphi 0, %s24
    %p21 = scmp.ge.s32.totalorder %s20, 4
    %s30 = sphi 0, %s32
    %s33 = sphi 0, %s30
    %s34 = sphi 0, %s33
    %s50 = sphi 0, %s34
    %s56 = sphi 0, %s58
    %s59 = sphi 0, %s56
    %s60 = sphi 0, %s59
    %s76 = sphi 0, %s60
    %s80 = sphi 0, %s80
    %s82 = sphi 0, %s80
    %s83 = sphi 0, %s82
    %s97 = sphi 0, %s83
    %s101 = sphi 0, %s101
    %s103 = sphi 0, %s101
    %s104 = sphi 0, %s103
    %s118 = sphi 0, %s104
    %s122 = sphi 0, %s122
    %s124 = sphi 0, %s122
    %s125 = sphi 0, %s124
    %s139 = sphi 0, %s125
    %s143 = sphi 0, %s143
    %s145 = sphi 0, %s143
    %s146 = sphi 0, %s145
    %s160 = sphi 0, %s146
    %s164 = sphi 0, %s164
    %s166 = sphi 0, %s164
    %s167 = sphi 0, %s166
    %s181 = sphi 0, %s167
    %s185 = sphi 0, %s185
    %s187 = sphi 0, %s185
    %s188 = sphi 0, %s187
    %s202 = sphi 0, %s188
    %s206 = sphi 0, %s206
    %s208 = sphi 0, %s206
    %s209 = sphi 0, %s208
    %s223 = sphi 0, %s209
    %s227 = sphi 0, %s227
    %s229 = sphi 0, %s227
    %s230 = sphi 0, %s229
    %s244 = sphi 0, %s230
    %s248 = sphi 0, %s248
    %s250 = sphi 0, %s248
    %s251 = sphi 0, %s250
    %s265 = sphi 0, %s251
    %s269 = sphi 0, %s269
    %s271 = sphi 0, %s269
    %s272 = sphi 0, %s271
    %s286 = sphi 0, %s272
    %s290 = sphi 0, %s290
    %s292 = sphi 0, %s290
    %s293 = sphi 0, %s292
    %s307 = sphi 0, %s293
    %s311 = sphi 0, %s311
    %s313 = sphi 0, %s311
    %s314 = sphi 0, %s313
    %s328 = sphi 0, %s314
    %s334 = sphi 0, %s336
    %s337 = sphi 0, %s334
    %s338 = sphi 0, %s337
    %s354 = sphi 0, %s338
  $region4: #{encoder_forward.4} parent=0 // loop_header_branch
    %23 = sbr.rel (%p21) target = $region8
  $region5: #{encoder_forward.4} parent=0 // loop_body
    %s25 = ssub.s32 %s20, 1
    %s26 = ssub.s32 %s20, 2
    %s27 = sadd.s32 %s20, 1
    %s28 = ssub.s32 %s20, %s27
    %p29 = scmp.eq.s32.totalorder %s28, 0
    %s31 = sadd.s32 %s30, 1
    %s32 = scalar_select %p29, %s30, %s31
    %p35 = pneg %p29
    %p36 = scmp.eq.s32.totalorder %s20, 1
    %p37 = por %p35, %p36
    %p38 = scmp.ne.s32.totalorder %s30, %s33
    %p39 = scmp.eq.s32.totalorder %s20, 0
    %p40 = por %p38, %p39
    %p41 = scmp.ne.s32.totalorder %s30, %s33
    %p42 = scmp.eq.s32.totalorder %s25, 1
    %p43 = por %p41, %p42
    %p44 = scmp.ne.s32.totalorder %s33, %s34
    %p45 = scmp.eq.s32.totalorder %s25, 0
    %p46 = por %p44, %p45
    %p47 = scmp.ne.s32.totalorder %s33, %s34
    %p48 = scmp.eq.s32.totalorder %s26, 1
    %p49 = por %p47, %p48
    %p51 = scmp.ne.s32.totalorder %s34, %s50
    %p52 = scmp.eq.s32.totalorder %s26, 0
    %p53 = por %p51, %p52
    %s54 = ssub.s32 %s20, %s27
    %p55 = scmp.eq.s32.totalorder %s54, 0
    %s57 = sadd.s32 %s56, 1
    %s58 = scalar_select %p55, %s56, %s57
    %p61 = pneg %p55
    %p62 = scmp.eq.s32.totalorder %s20, 1
    %p63 = por %p61, %p62
    %p64 = scmp.ne.s32.totalorder %s56, %s59
    %p65 = scmp.eq.s32.totalorder %s20, 0
    %p66 = por %p64, %p65
    %p67 = scmp.ne.s32.totalorder %s56, %s59
    %p68 = scmp.eq.s32.totalorder %s25, 1
    %p69 = por %p67, %p68
    %p70 = scmp.ne.s32.totalorder %s59, %s60
    %p71 = scmp.eq.s32.totalorder %s25, 0
    %p72 = por %p70, %p71
    %p73 = scmp.ne.s32.totalorder %s59, %s60
    %p74 = scmp.eq.s32.totalorder %s26, 1
    %p75 = por %p73, %p74
    %p77 = scmp.ne.s32.totalorder %s60, %s76
    %p78 = scmp.eq.s32.totalorder %s26, 0
    %p79 = por %p77, %p78
    %s81 = sadd.s32 %s80, 1
    %p84 = scmp.eq.s32.totalorder %s20, 1
    %p85 = scmp.ne.s32.totalorder %s80, %s82
    %p86 = scmp.eq.s32.totalorder %s20, 0
    %p87 = por %p85, %p86
    %p88 = scmp.ne.s32.totalorder %s80, %s82
    %p89 = scmp.eq.s32.totalorder %s25, 1
    %p90 = por %p88, %p89
    %p91 = scmp.ne.s32.totalorder %s82, %s83
    %p92 = scmp.eq.s32.totalorder %s25, 0
    %p93 = por %p91, %p92
    %p94 = scmp.ne.s32.totalorder %s82, %s83
    %p95 = scmp.eq.s32.totalorder %s26, 1
    %p96 = por %p94, %p95
    %p98 = scmp.ne.s32.totalorder %s83, %s97
    %p99 = scmp.eq.s32.totalorder %s26, 0
    %p100 = por %p98, %p99
    %s102 = sadd.s32 %s101, 1
    %p105 = scmp.eq.s32.totalorder %s20, 1
    %p106 = scmp.ne.s32.totalorder %s101, %s103
    %p107 = scmp.eq.s32.totalorder %s20, 0
    %p108 = por %p106, %p107
    %p109 = scmp.ne.s32.totalorder %s101, %s103
    %p110 = scmp.eq.s32.totalorder %s25, 1
    %p111 = por %p109, %p110
    %p112 = scmp.ne.s32.totalorder %s103, %s104
    %p113 = scmp.eq.s32.totalorder %s25, 0
    %p114 = por %p112, %p113
    %p115 = scmp.ne.s32.totalorder %s103, %s104
    %p116 = scmp.eq.s32.totalorder %s26, 1
    %p117 = por %p115, %p116
    %p119 = scmp.ne.s32.totalorder %s104, %s118
    %p120 = scmp.eq.s32.totalorder %s26, 0
    %p121 = por %p119, %p120
    %s123 = sadd.s32 %s122, 1
    %p126 = scmp.eq.s32.totalorder %s20, 1
    %p127 = scmp.ne.s32.totalorder %s122, %s124
    %p128 = scmp.eq.s32.totalorder %s20, 0
    %p129 = por %p127, %p128
    %p130 = scmp.ne.s32.totalorder %s122, %s124
    %p131 = scmp.eq.s32.totalorder %s25, 1
    %p132 = por %p130, %p131
    %p133 = scmp.ne.s32.totalorder %s124, %s125
    %p134 = scmp.eq.s32.totalorder %s25, 0
    %p135 = por %p133, %p134
    %p136 = scmp.ne.s32.totalorder %s124, %s125
    %p137 = scmp.eq.s32.totalorder %s26, 1
    %p138 = por %p136, %p137
    %p140 = scmp.ne.s32.totalorder %s125, %s139
    %p141 = scmp.eq.s32.totalorder %s26, 0
    %p142 = por %p140, %p141
    %s144 = sadd.s32 %s143, 1
    %p147 = scmp.eq.s32.totalorder %s20, 1
    %p148 = scmp.ne.s32.totalorder %s143, %s145
    %p149 = scmp.eq.s32.totalorder %s20, 0
    %p150 = por %p148, %p149
    %p151 = scmp.ne.s32.totalorder %s143, %s145
    %p152 = scmp.eq.s32.totalorder %s25, 1
    %p153 = por %p151, %p152
    %p154 = scmp.ne.s32.totalorder %s145, %s146
    %p155 = scmp.eq.s32.totalorder %s25, 0
    %p156 = por %p154, %p155
    %p157 = scmp.ne.s32.totalorder %s145, %s146
    %p158 = scmp.eq.s32.totalorder %s26, 1
    %p159 = por %p157, %p158
    %p161 = scmp.ne.s32.totalorder %s146, %s160
    %p162 = scmp.eq.s32.totalorder %s26, 0
    %p163 = por %p161, %p162
    %s165 = sadd.s32 %s164, 1
    %p168 = scmp.eq.s32.totalorder %s20, 1
    %p169 = scmp.ne.s32.totalorder %s164, %s166
    %p170 = scmp.eq.s32.totalorder %s20, 0
    %p171 = por %p169, %p170
    %p172 = scmp.ne.s32.totalorder %s164, %s166
    %p173 = scmp.eq.s32.totalorder %s25, 1
    %p174 = por %p172, %p173
    %p175 = scmp.ne.s32.totalorder %s166, %s167
    %p176 = scmp.eq.s32.totalorder %s25, 0
    %p177 = por %p175, %p176
    %p178 = scmp.ne.s32.totalorder %s166, %s167
    %p179 = scmp.eq.s32.totalorder %s26, 1
    %p180 = por %p178, %p179
    %p182 = scmp.ne.s32.totalorder %s167, %s181
    %p183 = scmp.eq.s32.totalorder %s26, 0
    %p184 = por %p182, %p183
    %s186 = sadd.s32 %s185, 1
    %p189 = scmp.eq.s32.totalorder %s20, 1
    %p190 = scmp.ne.s32.totalorder %s185, %s187
    %p191 = scmp.eq.s32.totalorder %s20, 0
    %p192 = por %p190, %p191
    %p193 = scmp.ne.s32.totalorder %s185, %s187
    %p194 = scmp.eq.s32.totalorder %s25, 1
    %p195 = por %p193, %p194
    %p196 = scmp.ne.s32.totalorder %s187, %s188
    %p197 = scmp.eq.s32.totalorder %s25, 0
    %p198 = por %p196, %p197
    %p199 = scmp.ne.s32.totalorder %s187, %s188
    %p200 = scmp.eq.s32.totalorder %s26, 1
    %p201 = por %p199, %p200
    %p203 = scmp.ne.s32.totalorder %s188, %s202
    %p204 = scmp.eq.s32.totalorder %s26, 0
    %p205 = por %p203, %p204
    %s207 = sadd.s32 %s206, 1
    %p210 = scmp.eq.s32.totalorder %s20, 1
    %p211 = scmp.ne.s32.totalorder %s206, %s208
    %p212 = scmp.eq.s32.totalorder %s20, 0
    %p213 = por %p211, %p212
    %p214 = scmp.ne.s32.totalorder %s206, %s208
    %p215 = scmp.eq.s32.totalorder %s25, 1
    %p216 = por %p214, %p215
    %p217 = scmp.ne.s32.totalorder %s208, %s209
    %p218 = scmp.eq.s32.totalorder %s25, 0
    %p219 = por %p217, %p218
    %p220 = scmp.ne.s32.totalorder %s208, %s209
    %p221 = scmp.eq.s32.totalorder %s26, 1
    %p222 = por %p220, %p221
    %p224 = scmp.ne.s32.totalorder %s209, %s223
    %p225 = scmp.eq.s32.totalorder %s26, 0
    %p226 = por %p224, %p225
    %s228 = sadd.s32 %s227, 1
    %p231 = scmp.eq.s32.totalorder %s20, 1
    %p232 = scmp.ne.s32.totalorder %s227, %s229
    %p233 = scmp.eq.s32.totalorder %s20, 0
    %p234 = por %p232, %p233
    %p235 = scmp.ne.s32.totalorder %s227, %s229
    %p236 = scmp.eq.s32.totalorder %s25, 1
    %p237 = por %p235, %p236
    %p238 = scmp.ne.s32.totalorder %s229, %s230
    %p239 = scmp.eq.s32.totalorder %s25, 0
    %p240 = por %p238, %p239
    %p241 = scmp.ne.s32.totalorder %s229, %s230
    %p242 = scmp.eq.s32.totalorder %s26, 1
    %p243 = por %p241, %p242
    %p245 = scmp.ne.s32.totalorder %s230, %s244
    %p246 = scmp.eq.s32.totalorder %s26, 0
    %p247 = por %p245, %p246
    %s249 = sadd.s32 %s248, 1
    %p252 = scmp.eq.s32.totalorder %s20, 1
    %p253 = scmp.ne.s32.totalorder %s248, %s250
    %p254 = scmp.eq.s32.totalorder %s20, 0
    %p255 = por %p253, %p254
    %p256 = scmp.ne.s32.totalorder %s248, %s250
    %p257 = scmp.eq.s32.totalorder %s25, 1
    %p258 = por %p256, %p257
    %p259 = scmp.ne.s32.totalorder %s250, %s251
    %p260 = scmp.eq.s32.totalorder %s25, 0
    %p261 = por %p259, %p260
    %p262 = scmp.ne.s32.totalorder %s250, %s251
    %p263 = scmp.eq.s32.totalorder %s26, 1
    %p264 = por %p262, %p263
    %p266 = scmp.ne.s32.totalorder %s251, %s265
    %p267 = scmp.eq.s32.totalorder %s26, 0
    %p268 = por %p266, %p267
    %s270 = sadd.s32 %s269, 1
    %p273 = scmp.eq.s32.totalorder %s20, 1
    %p274 = scmp.ne.s32.totalorder %s269, %s271
    %p275 = scmp.eq.s32.totalorder %s20, 0
    %p276 = por %p274, %p275
    %p277 = scmp.ne.s32.totalorder %s269, %s271
    %p278 = scmp.eq.s32.totalorder %s25, 1
    %p279 = por %p277, %p278
    %p280 = scmp.ne.s32.totalorder %s271, %s272
    %p281 = scmp.eq.s32.totalorder %s25, 0
    %p282 = por %p280, %p281
    %p283 = scmp.ne.s32.totalorder %s271, %s272
    %p284 = scmp.eq.s32.totalorder %s26, 1
    %p285 = por %p283, %p284
    %p287 = scmp.ne.s32.totalorder %s272, %s286
    %p288 = scmp.eq.s32.totalorder %s26, 0
    %p289 = por %p287, %p288
    %s291 = sadd.s32 %s290, 1
    %p294 = scmp.eq.s32.totalorder %s20, 1
    %p295 = scmp.ne.s32.totalorder %s290, %s292
    %p296 = scmp.eq.s32.totalorder %s20, 0
    %p297 = por %p295, %p296
    %p298 = scmp.ne.s32.totalorder %s290, %s292
    %p299 = scmp.eq.s32.totalorder %s25, 1
    %p300 = por %p298, %p299
    %p301 = scmp.ne.s32.totalorder %s292, %s293
    %p302 = scmp.eq.s32.totalorder %s25, 0
    %p303 = por %p301, %p302
    %p304 = scmp.ne.s32.totalorder %s292, %s293
    %p305 = scmp.eq.s32.totalorder %s26, 1
    %p306 = por %p304, %p305
    %p308 = scmp.ne.s32.totalorder %s293, %s307
    %p309 = scmp.eq.s32.totalorder %s26, 0
    %p310 = por %p308, %p309
    %s312 = sadd.s32 %s311, 1
    %p315 = scmp.eq.s32.totalorder %s20, 1
    %p316 = scmp.ne.s32.totalorder %s311, %s313
    %p317 = scmp.eq.s32.totalorder %s20, 0
    %p318 = por %p316, %p317
    %p319 = scmp.ne.s32.totalorder %s311, %s313
    %p320 = scmp.eq.s32.totalorder %s25, 1
    %p321 = por %p319, %p320
    %p322 = scmp.ne.s32.totalorder %s313, %s314
    %p323 = scmp.eq.s32.totalorder %s25, 0
    %p324 = por %p322, %p323
    %p325 = scmp.ne.s32.totalorder %s313, %s314
    %p326 = scmp.eq.s32.totalorder %s26, 1
    %p327 = por %p325, %p326
    %p329 = scmp.ne.s32.totalorder %s314, %s328
    %p330 = scmp.eq.s32.totalorder %s26, 0
    %p331 = por %p329, %p330
    %s332 = ssub.s32 %s20, %s27
    %p333 = scmp.eq.s32.totalorder %s332, 0
    %s335 = sadd.s32 %s334, 1
    %s336 = scalar_select %p333, %s334, %s335
    %p339 = pneg %p333
    %p340 = scmp.eq.s32.totalorder %s20, 1
    %p341 = por %p339, %p340
    %p342 = scmp.ne.s32.totalorder %s334, %s337
    %p343 = scmp.eq.s32.totalorder %s20, 0
    %p344 = por %p342, %p343
    %p345 = scmp.ne.s32.totalorder %s334, %s337
    %p346 = scmp.eq.s32.totalorder %s25, 1
    %p347 = por %p345, %p346
    %p348 = scmp.ne.s32.totalorder %s337, %s338
    %p349 = scmp.eq.s32.totalorder %s25, 0
    %p350 = por %p348, %p349
    %p351 = scmp.ne.s32.totalorder %s337, %s338
    %p352 = scmp.eq.s32.totalorder %s26, 1
    %p353 = por %p351, %p352
    %p355 = scmp.ne.s32.totalorder %s338, %s354
    %p356 = scmp.eq.s32.totalorder %s26, 0
    %p357 = por %p355, %p356
    %p358 = scmp.le.s32.totalorder 1, %s20
    %p359 = scmp.lt.s32.totalorder %s20, 3
    %p360 = pnand %p358, %p359
    %p361 = pneg %p360
    // Predicated region
    $region9: #{encoder_forward.4} parent=5 // pred_check
      _
    $region10: #{encoder_forward.4} parent=5 // pred_check_branch
      %363 = sbr.rel (%p360) target = $region12
    $region11: #{encoder_forward.4} parent=5 // pred_region
      %s364 = ssub.s32 %s20, 1
      // Predicated region
      $region13: #{encoder_forward.4} parent=11 // pred_check
        %p365 = pneg %p93
      $region14: #{encoder_forward.4} parent=11 // pred_check_branch
        %367 = sbr.rel (%p365) target = $region16
      $region15: #{encoder_forward.4} parent=11 // pred_region
        _
      $region16: #{encoder_forward.4} parent=11 // pred_fallthru
        _
      // Predicated region
      $region17: #{encoder_forward.4} parent=11 // pred_check
        %p368 = pneg %p114
      $region18: #{encoder_forward.4} parent=11 // pred_check_branch
        %370 = sbr.rel (%p368) target = $region20
      $region19: #{encoder_forward.4} parent=11 // pred_region
        _
      $region20: #{encoder_forward.4} parent=11 // pred_fallthru
        _
      // Predicated region
      $region21: #{encoder_forward.4} parent=11 // pred_check
        %p371 = pneg %p135
      $region22: #{encoder_forward.4} parent=11 // pred_check_branch
        %373 = sbr.rel (%p371) target = $region24
      $region23: #{encoder_forward.4} parent=11 // pred_region
        _
      $region24: #{encoder_forward.4} parent=11 // pred_fallthru
        _
      // Predicated region
      $region25: #{encoder_forward.4} parent=11 // pred_check
        %p374 = pneg %p156
      $region26: #{encoder_forward.4} parent=11 // pred_check_branch
        %376 = sbr.rel (%p374) target = $region28
      $region27: #{encoder_forward.4} parent=11 // pred_region
        _
      $region28: #{encoder_forward.4} parent=11 // pred_fallthru
        _
      // Predicated region
      $region29: #{encoder_forward.4} parent=11 // pred_check
        %p377 = pneg %p177
      $region30: #{encoder_forward.4} parent=11 // pred_check_branch
        %379 = sbr.rel (%p377) target = $region32
      $region31: #{encoder_forward.4} parent=11 // pred_region
        _
      $region32: #{encoder_forward.4} parent=11 // pred_fallthru
        _
      // Predicated region
      $region33: #{encoder_forward.4} parent=11 // pred_check
        %p380 = pneg %p198
      $region34: #{encoder_forward.4} parent=11 // pred_check_branch
        %382 = sbr.rel (%p380) target = $region36
      $region35: #{encoder_forward.4} parent=11 // pred_region
        _
      $region36: #{encoder_forward.4} parent=11 // pred_fallthru
        _
      // Predicated region
      $region37: #{encoder_forward.4} parent=11 // pred_check
        %p383 = pneg %p219
      $region38: #{encoder_forward.4} parent=11 // pred_check_branch
        %385 = sbr.rel (%p383) target = $region40
      $region39: #{encoder_forward.4} parent=11 // pred_region
        _
      $region40: #{encoder_forward.4} parent=11 // pred_fallthru
        _
      // Predicated region
      $region41: #{encoder_forward.4} parent=11 // pred_check
        %p386 = pneg %p240
      $region42: #{encoder_forward.4} parent=11 // pred_check_branch
        %388 = sbr.rel (%p386) target = $region44
      $region43: #{encoder_forward.4} parent=11 // pred_region
        _
      $region44: #{encoder_forward.4} parent=11 // pred_fallthru
        _
      // Predicated region
      $region45: #{encoder_forward.4} parent=11 // pred_check
        %p389 = pneg %p261
      $region46: #{encoder_forward.4} parent=11 // pred_check_branch
        %391 = sbr.rel (%p389) target = $region48
      $region47: #{encoder_forward.4} parent=11 // pred_region
        _
      $region48: #{encoder_forward.4} parent=11 // pred_fallthru
        _
      // Predicated region
      $region49: #{encoder_forward.4} parent=11 // pred_check
        %p392 = pneg %p282
      $region50: #{encoder_forward.4} parent=11 // pred_check_branch
        %394 = sbr.rel (%p392) target = $region52
      $region51: #{encoder_forward.4} parent=11 // pred_region
        _
      $region52: #{encoder_forward.4} parent=11 // pred_fallthru
        _
      // Predicated region
      $region53: #{encoder_forward.4} parent=11 // pred_check
        %p395 = pneg %p303
      $region54: #{encoder_forward.4} parent=11 // pred_check_branch
        %397 = sbr.rel (%p395) target = $region56
      $region55: #{encoder_forward.4} parent=11 // pred_region
        _
      $region56: #{encoder_forward.4} parent=11 // pred_fallthru
        _
      // Predicated region
      $region57: #{encoder_forward.4} parent=11 // pred_check
        %p398 = pneg %p324
      $region58: #{encoder_forward.4} parent=11 // pred_check_branch
        %400 = sbr.rel (%p398) target = $region60
      $region59: #{encoder_forward.4} parent=11 // pred_region
        _
      $region60: #{encoder_forward.4} parent=11 // pred_fallthru
        _
    $region12: #{encoder_forward.4} parent=5 // pred_fallthru
      _
    %p401 = scmp.lt.s32.totalorder %s20, 2
    // Predicated region
    $region61: #{encoder_forward.4} parent=5 // pred_check
      %p402 = pneg %p401
    $region62: #{encoder_forward.4} parent=5 // pred_check_branch
      %404 = sbr.rel (%p402) target = $region64
    $region63: #{encoder_forward.4} parent=5 // pred_region
      // Predicated region
      $region65: #{encoder_forward.4} parent=63 // pred_check
        %p405 = pneg %p40
      $region66: #{encoder_forward.4} parent=63 // pred_check_branch
        %407 = sbr.rel (%p405) target = $region68
      $region67: #{encoder_forward.4} parent=63 // pred_region
        %p408 = scmp.lt.s32.totalorder %s20, 1
        %s409 = scalar_select %p408, %s20, 1
        %s410 = smul.addr %s409, 2
        %s411 = smul.addr %s410, 4
        %s412 = scalar_lea.vmem %s0, %s411
      $region68: #{encoder_forward.4} parent=63 // pred_fallthru
        _
      // Predicated region
      $region69: #{encoder_forward.4} parent=63 // pred_check
        %p413 = pneg %p66
      $region70: #{encoder_forward.4} parent=63 // pred_check_branch
        %415 = sbr.rel (%p413) target = $region72
      $region71: #{encoder_forward.4} parent=63 // pred_region
        %p416 = scmp.lt.s32.totalorder %s20, 1
        %s417 = scalar_select %p416, %s20, 1
        %s418 = scalar_lea.vmem %s1, %s417
      $region72: #{encoder_forward.4} parent=63 // pred_fallthru
        _
    $region64: #{encoder_forward.4} parent=5 // pred_fallthru
      _
    %p419 = scmp.le.s32.totalorder 1, %s20
    %p420 = scmp.lt.s32.totalorder %s20, 3
    %p421 = pnand %p419, %p420
    %p422 = pneg %p421
    // Predicated region
    $region73: #{encoder_forward.4} parent=5 // pred_check
      _
    $region74: #{encoder_forward.4} parent=5 // pred_check_branch
      %424 = sbr.rel (%p421) target = $region76
    $region75: #{encoder_forward.4} parent=5 // pred_region
      %s425 = ssub.s32 %s20, 1
      %p426 = scmp.lt.s32.totalorder %s25, 1
      %s427 = scalar_select %p426, %s25, 1
      %s428 = smul.addr %s427, 2
      %s429 = smul.addr %s428, 4
      %s430 = scalar_lea.vmem %s0, %s429
      %p431 = pneg %p46
      %p432 = pneg %p43
      %p433 = scmp.lt.s32.totalorder %s25, 1
      %s434 = scalar_select %p433, %s25, 1
      %s435 = scalar_lea.vmem %s1, %s434
      %p436 = pneg %p72
      %p437 = pneg %p69
      %p438 = pneg %p93
      %p439 = pneg %p90
      %p440 = pneg %p114
      %p441 = pneg %p111
      %p442 = pneg %p135
      %p443 = pneg %p132
      %p444 = pneg %p156
      %p445 = pneg %p153
      %p446 = pneg %p177
      %p447 = pneg %p174
      %p448 = pneg %p198
      %p449 = pneg %p195
      %p450 = pneg %p219
      %p451 = pneg %p216
      %p452 = pneg %p240
      %p453 = pneg %p237
      %p454 = pneg %p261
      %p455 = pneg %p258
      %p456 = pneg %p282
      %p457 = pneg %p279
      %p458 = pneg %p303
      %p459 = pneg %p300
      %p460 = pneg %p324
      %p461 = pneg %p321
      %p462 = pneg %p350
      %p463 = pneg %p347
      %p464 = scmp.lt.s32.totalorder %s25, 1
      %s465 = scalar_select %p464, %s25, 1
      %s466 = smul.addr %s465, 2
      %s467 = smul.addr %s466, 4
      %s468 = scalar_lea.vmem %s14, %s467
      %p469 = scmp.lt.s32.totalorder %s25, 1
      %s470 = scalar_select %p469, %s25, 1
      %s471 = smul.addr %s470, 2
      %s472 = smul.addr %s471, 4
      %s473 = scalar_lea.vmem %s0, %s472
      %p474 = scmp.lt.s32.totalorder %s25, 1
      %s475 = scalar_select %p474, %s25, 1
      %s476 = scalar_lea.vmem %s1, %s475
      %p477 = scmp.lt.s32.totalorder %s25, 1
      %s478 = scalar_select %p477, %s25, 1
      %s479 = smul.addr %s478, 2
      %s480 = smul.addr %s479, 4
      %s481 = scalar_lea.vmem %s14, %s480
      %v483 = vld [vmem:[%s473] sm:$0xf]
      %v484 = vld [vmem:[%s473 + $0x4] sm:$0x1]
      %v485 = vld [vmem:[%s476] sm:$0x1]
      %v486 = vld [vmem:[%s2] sm:$0xff]
      %v487 = vld [vmem:[%s2 + $0x8] sm:$0xff]
      %v488 = vld [vmem:[%s2 + $0x10] sm:$0xff]
      %v489 = vld [vmem:[%s2 + $0x18] sm:$0xff]
      %v490 = vld [vmem:[%s2 + $0x20] sm:$0xff]
      %v491 = vld [vmem:[%s2 + $0x28] sm:$0xff]
      %v492 = vld [vmem:[%s2 + $0x30] sm:$0xff]
      %v493 = vld [vmem:[%s2 + $0x38] sm:$0xff]
      %v494 = vld [vmem:[%s2 + $0x40] sm:$0xff]
      %v495 = vld [vmem:[%s2 + $0x48] sm:$0xff]
      %v496 = vld [vmem:[%s2 + $0x50] sm:$0xff]
      %v497 = vld [vmem:[%s2 + $0x58] sm:$0xff]
      %v498 = vld [vmem:[%s2 + $0x60] sm:$0xff]
      %v499 = vld [vmem:[%s2 + $0x68] sm:$0xff]
      %v500 = vld [vmem:[%s2 + $0x70] sm:$0xff]
      %v501 = vld [vmem:[%s2 + $0x78] sm:$0xff]
      %v502 = vld [vmem:[%s2 + $0x80] sm:$0xff]
      %v503 = vld [vmem:[%s2 + $0x88] sm:$0xff]
      %v504 = vld [vmem:[%s2 + $0x90] sm:$0xff]
      %v505 = vld [vmem:[%s2 + $0x98] sm:$0xff]
      %v506 = vld [vmem:[%s2 + $0xa0] sm:$0xff]
      %v507 = vld [vmem:[%s2 + $0xa8] sm:$0xff]
      %v508 = vld [vmem:[%s2 + $0xb0] sm:$0xff]
      %v509 = vld [vmem:[%s2 + $0xb8] sm:$0xff]
      %v510 = vld [vmem:[%s3] sm:$0x3f]
      %v512 = vperm.slane %v510, 0
      %v513 = vperm.slane %v510, 1
      %v514 = vperm.slane %v510, 2
      %v515 = vperm.slane %v510, 3
      %v516 = vperm.slane %v510, 4
      %v517 = vperm.slane %v510, 5
      %v526 = vunpack.c.l.b16 %v483
      %v527 = vunpack.c.l.b16 %v484
      %v528 = vpack.c.b16 %v527, %v526
      %v553 = vunpack.c.l.b16 %v486
      %v554 = vunpack.c.h.b16 %v486
      %v555 = vunpack.c.l.b16 %v487
      %v556 = vunpack.c.h.b16 %v487
      %v557 = vunpack.c.l.b16 %v488
      %v558 = vunpack.c.h.b16 %v488
      %v559 = vunpack.c.l.b16 %v489
      %v560 = vunpack.c.h.b16 %v489
      %v561 = vunpack.c.l.b16 %v490
      %v562 = vunpack.c.h.b16 %v490
      %v563 = vunpack.c.l.b16 %v491
      %v564 = vunpack.c.h.b16 %v491
      %v565 = vunpack.c.l.b16 %v492
      %v566 = vunpack.c.h.b16 %v492
      %v567 = vunpack.c.l.b16 %v493
      %v568 = vunpack.c.h.b16 %v493
      %v569 = vunpack.c.l.b16 %v494
      %v570 = vunpack.c.h.b16 %v494
      %v571 = vunpack.c.l.b16 %v495
      %v572 = vunpack.c.h.b16 %v495
      %v573 = vunpack.c.l.b16 %v496
      %v574 = vunpack.c.h.b16 %v496
      %v575 = vunpack.c.l.b16 %v497
      %v576 = vunpack.c.h.b16 %v497
      %v577 = vunpack.c.l.b16 %v498
      %v578 = vunpack.c.h.b16 %v498
      %v579 = vunpack.c.l.b16 %v499
      %v580 = vunpack.c.h.b16 %v499
      %v581 = vunpack.c.l.b16 %v500
      %v582 = vunpack.c.h.b16 %v500
      %v583 = vunpack.c.l.b16 %v501
      %v584 = vunpack.c.h.b16 %v501
      %v585 = vunpack.c.l.b16 %v502
      %v586 = vunpack.c.h.b16 %v502
      %v587 = vunpack.c.l.b16 %v503
      %v588 = vunpack.c.h.b16 %v503
      %v589 = vunpack.c.l.b16 %v504
      %v590 = vunpack.c.h.b16 %v504
      %v591 = vunpack.c.l.b16 %v505
      %v592 = vunpack.c.h.b16 %v505
      %v593 = vunpack.c.l.b16 %v506
      %v594 = vunpack.c.h.b16 %v506
      %v595 = vunpack.c.l.b16 %v507
      %v596 = vunpack.c.h.b16 %v507
      %v597 = vunpack.c.l.b16 %v508
      %v598 = vunpack.c.h.b16 %v508
      %v599 = vunpack.c.l.b16 %v509
      %v600 = vunpack.c.h.b16 %v509
      %v601 = vpack.c.b16 %v559, %v553
      %v602 = vpack.c.b16 %v560, %v554
      %v603 = vpack.c.b16 %v561, %v555
      %v604 = vpack.c.b16 %v562, %v556
      %v605 = vpack.c.b16 %v563, %v557
      %v606 = vpack.c.b16 %v564, %v558
      %v607 = vpack.c.b16 %v571, %v565
      %v608 = vpack.c.b16 %v572, %v566
      %v609 = vpack.c.b16 %v573, %v567
      %v610 = vpack.c.b16 %v574, %v568
      %v611 = vpack.c.b16 %v575, %v569
      %v612 = vpack.c.b16 %v576, %v570
      %v613 = vpack.c.b16 %v583, %v577
      %v614 = vpack.c.b16 %v584, %v578
      %v615 = vpack.c.b16 %v585, %v579
      %v616 = vpack.c.b16 %v586, %v580
      %v617 = vpack.c.b16 %v587, %v581
      %v618 = vpack.c.b16 %v588, %v582
      %v619 = vpack.c.b16 %v595, %v589
      %v620 = vpack.c.b16 %v596, %v590
      %v621 = vpack.c.b16 %v597, %v591
      %v622 = vpack.c.b16 %v598, %v592
      %v623 = vpack.c.b16 %v599, %v593
      %v624 = vpack.c.b16 %v600, %v594
      %vm649 = vcmask 523264
      %v651 = vsel %vm649, %v528, 0
      %653 = vmatpush.bf16.msra.mxu0 0
      %654 = vmatpush.bf16.msra.mxu0 0
      %655 = vmatpush.bf16.msra.mxu0 0
      %656 = vmatpush.bf16.msra.mxu0 0
      %657 = vmatpush.bf16.msra.mxu0 %v619
      %658 = vmatpush.bf16.msra.mxu0 %v613
      %659 = vmatpush.bf16.msra.mxu0 %v607
      %660 = vmatpush.bf16.msra.mxu0 %v601
      %661 = vmatmul.bf16.gmra.mxu0 %v651
      %v662 = vpop.f32.mrf.mxu0
      %v663 = vadd.f32 %v512, %v662
      %v664 = vpop.f32.mrf.mxu0
      %v665 = vadd.f32 %v512, %v664
      %666 = vdwg.mxu0
      %667 = vmatpush.bf16.msra.mxu0 0
      %668 = vmatpush.bf16.msra.mxu0 0
      %669 = vmatpush.bf16.msra.mxu0 0
      %670 = vmatpush.bf16.msra.mxu0 0
      %671 = vmatpush.bf16.msra.mxu0 %v620
      %672 = vmatpush.bf16.msra.mxu0 %v614
      %673 = vmatpush.bf16.msra.mxu0 %v608
      %674 = vmatpush.bf16.msra.mxu0 %v602
      %675 = vmatmul.bf16.gmra.mxu0 %v651
      %v676 = vpop.f32.mrf.mxu0
      %v677 = vadd.f32 %v513, %v676
      %v678 = vpop.f32.mrf.mxu0
      %v679 = vadd.f32 %v513, %v678
      %680 = vdwg.mxu0
      %681 = vmatpush.bf16.msra.mxu0 0
      %682 = vmatpush.bf16.msra.mxu0 0
      %683 = vmatpush.bf16.msra.mxu0 0
      %684 = vmatpush.bf16.msra.mxu0 0
      %685 = vmatpush.bf16.msra.mxu0 %v621
      %686 = vmatpush.bf16.msra.mxu0 %v615
      %687 = vmatpush.bf16.msra.mxu0 %v609
      %688 = vmatpush.bf16.msra.mxu0 %v603
      %689 = vmatmul.bf16.gmra.mxu0 %v651
      %v690 = vpop.f32.mrf.mxu0
      %v691 = vadd.f32 %v514, %v690
      %v692 = vpop.f32.mrf.mxu0
      %v693 = vadd.f32 %v514, %v692
      %694 = vdwg.mxu0
      %695 = vmatpush.bf16.msra.mxu0 0
      %696 = vmatpush.bf16.msra.mxu0 0
      %697 = vmatpush.bf16.msra.mxu0 0
      %698 = vmatpush.bf16.msra.mxu0 0
      %699 = vmatpush.bf16.msra.mxu0 %v622
      %700 = vmatpush.bf16.msra.mxu0 %v616
      %701 = vmatpush.bf16.msra.mxu0 %v610
      %702 = vmatpush.bf16.msra.mxu0 %v604
      %703 = vmatmul.bf16.gmra.mxu0 %v651
      %v704 = vpop.f32.mrf.mxu0
      %v705 = vadd.f32 %v515, %v704
      %v706 = vpop.f32.mrf.mxu0
      %v707 = vadd.f32 %v515, %v706
      %708 = vdwg.mxu0
      %709 = vmatpush.bf16.msra.mxu0 0
      %710 = vmatpush.bf16.msra.mxu0 0
      %711 = vmatpush.bf16.msra.mxu0 0
      %712 = vmatpush.bf16.msra.mxu0 0
      %713 = vmatpush.bf16.msra.mxu0 %v623
      %714 = vmatpush.bf16.msra.mxu0 %v617
      %715 = vmatpush.bf16.msra.mxu0 %v611
      %716 = vmatpush.bf16.msra.mxu0 %v605
      %717 = vmatmul.bf16.gmra.mxu0 %v651
      %v718 = vpop.f32.mrf.mxu0
      %v719 = vadd.f32 %v516, %v718
      %v720 = vpop.f32.mrf.mxu0
      %v721 = vadd.f32 %v516, %v720
      %722 = vdwg.mxu0
      %723 = vmatpush.bf16.msra.mxu0 0
      %724 = vmatpush.bf16.msra.mxu0 0
      %725 = vmatpush.bf16.msra.mxu0 0
      %726 = vmatpush.bf16.msra.mxu0 0
      %727 = vmatpush.bf16.msra.mxu0 %v624
      %728 = vmatpush.bf16.msra.mxu0 %v618
      %729 = vmatpush.bf16.msra.mxu0 %v612
      %730 = vmatpush.bf16.msra.mxu0 %v606
      %731 = vmatmul.bf16.gmra.mxu0 %v651
      %v732 = vpop.f32.mrf.mxu0
      %v733 = vadd.f32 %v517, %v732
      %v734 = vpop.f32.mrf.mxu0
      %v735 = vadd.f32 %v517, %v734
      %736 = vdwg.mxu0
      %v737 = vpack.c.bf16 %v677, %v663
      %v738 = vpack.c.bf16 %v705, %v691
      %v739 = vpack.c.bf16 %v733, %v719
      %v740 = vpack.c.bf16 %v679, %v665
      %v741 = vpack.c.bf16 %v707, %v693
      %v742 = vpack.c.bf16 %v735, %v721
      %v744 = vperm.slane %v485, 0
      %v748 = vunpack.c.l.b16 %v737
      %v749 = vunpack.c.l.b16 %v740
      %v750 = vpack.c.b16 %v749, %v748
      %v754 = vunpack.c.l.b16 %v738
      %v755 = vunpack.c.l.b16 %v741
      %v756 = vpack.c.b16 %v755, %v754
      %758 = vmatpush.bf16.xpose.msra.mxu0 0
      %759 = vmatpush.bf16.xpose.msra.mxu0 0
      %760 = vmatpush.bf16.xpose.msra.mxu0 0
      %761 = vmatpush.bf16.xpose.msra.mxu0 0
      %762 = vmatpush.bf16.xpose.msra.mxu0 0
      %763 = vmatpush.bf16.xpose.msra.mxu0 0
      %764 = vmatpush.bf16.xpose.msra.mxu0 0
      %765 = vmatpush.bf16.xpose.msra.mxu0 %v756
      %766 = vmatmul.bf16.gmra.mxu0 %v750
      %v767 = vpop.f32.mrf.mxu0
      %v768 = vadd.f32 %v744, %v767
      %v769 = vpop.f32.mrf.mxu0
      %v770 = vadd.f32 %v744, %v769
      %771 = vdwg.mxu0
      %vm772 = vcmask 80896
      %v773 = vsel %vm772, %v768, -inf
      %774 = vmax.xlane.f32.xlu0 %v773
      %v775 = vpop.xlane.xlu0 %774
      %vm776 = vcmask 74752
      %v777 = vsel %vm776, %v770, -inf
      %778 = vmax.xlane.f32.xlu0 %v777
      %v779 = vpop.xlane.xlu0 %778
      %v780 = vsub.f32 %v768, %v775
      %v781 = vsub.f32 %v770, %v779
      %v782 = vmul.f32 %v780, 1.442695
      %v783 = vpow.pop %v782
      %v784 = vmul.f32 %v781, 1.442695
      %v785 = vpow.pop %v784
      %v786 = vsel %vm772, %v783, 0.0
      %787 = vadd.xlane.f32.xlu0 %v786
      %v788 = vpop.xlane.xlu0 %787
      %v789 = vsel %vm776, %v785, 0.0
      %790 = vadd.xlane.f32.xlu0 %v789
      %v791 = vpop.xlane.xlu0 %790
      %v792 = vrcp.pop %v788
      %v793 = vmul.f32 %v788, %v792
      %v794 = vsub.f32 1.0, %v793
      %v795 = vmul.f32 %v792, %v794
      %v796 = vadd.f32 %v792, %v795
      %vm797 = vweird.f32 %v788
      %vm798 = vweird.f32 %v792
      %vm799 = vmor %vm797, %vm798
      %v800 = vsel %vm799, %v792, %v796
      %v801 = vand.u32 2147483647, %v788
      %vm802 = vcmp.eq.f32.partialorder %v801, 8.507059e+37
      %v803 = vand.u32 %v788, 2147483648
      %v804 = vor.u32 1.1754944e-38, %v803
      %v805 = vsel %vm802, %v804, %v800
      %v806 = vrcp.pop %v791
      %v807 = vmul.f32 %v791, %v806
      %v808 = vsub.f32 1.0, %v807
      %v809 = vmul.f32 %v806, %v808
      %v810 = vadd.f32 %v806, %v809
      %vm811 = vweird.f32 %v791
      %vm812 = vweird.f32 %v806
      %vm813 = vmor %vm811, %vm812
      %v814 = vsel %vm813, %v806, %v810
      %v815 = vand.u32 2147483647, %v791
      %vm816 = vcmp.eq.f32.partialorder %v815, 8.507059e+37
      %v817 = vand.u32 %v791, 2147483648
      %v818 = vor.u32 1.1754944e-38, %v817
      %v819 = vsel %vm816, %v818, %v814
      %v820 = vmul.f32 %v783, %v805
      %v821 = vmul.f32 %v785, %v819
      %v822 = vpack.c.bf16 %v821, %v820
      %v825 = vunpack.c.l.b16 %v739
      %v826 = vunpack.c.l.b16 %v742
      %v827 = vpack.c.b16 %v826, %v825
      %v829 = vsel %vm772, %v822, 0
      %vm831 = vcmask 1044480
      %v833 = vsel %vm831, %v827, 0
      %835 = vmatpush.bf16.msra.mxu0 0
      %836 = vmatpush.bf16.msra.mxu0 0
      %837 = vmatpush.bf16.msra.mxu0 0
      %838 = vmatpush.bf16.msra.mxu0 0
      %839 = vmatpush.bf16.msra.mxu0 0
      %840 = vmatpush.bf16.msra.mxu0 0
      %841 = vmatpush.bf16.msra.mxu0 0
      %842 = vmatpush.bf16.msra.mxu0 %v833
      %843 = vmatmul.bf16.gmra.mxu0 %v829
      %v844 = vpop.f32.mrf.mxu0
      %v845 = vadd.f32 0.0, %v844
      %v846 = vpop.f32.mrf.mxu0
      %v847 = vadd.f32 0.0, %v846
      %848 = vdwg.mxu0
      %v849 = vpack.c.bf16 %v845, %v845
      %v850 = vpack.c.bf16 %v847, %v847
      %851 = vst [vmem:[#allocation2] sm:$0xf] %v849
      %852 = vst [vmem:[#allocation2 + $0x8] sm:$0x1] %v850
      %v853 = vunpack.c.h.b16 %v737
      %v854 = vunpack.c.h.b16 %v740
      %v855 = vpack.c.b16 %v854, %v853
      %v857 = vunpack.c.h.b16 %v738
      %v858 = vunpack.c.h.b16 %v741
      %v859 = vpack.c.b16 %v858, %v857
      %861 = vmatpush.bf16.xpose.msra.mxu0 0
      %862 = vmatpush.bf16.xpose.msra.mxu0 0
      %863 = vmatpush.bf16.xpose.msra.mxu0 0
      %864 = vmatpush.bf16.xpose.msra.mxu0 0
      %865 = vmatpush.bf16.xpose.msra.mxu0 0
      %866 = vmatpush.bf16.xpose.msra.mxu0 0
      %867 = vmatpush.bf16.xpose.msra.mxu0 0
      %868 = vmatpush.bf16.xpose.msra.mxu0 %v859
      %869 = vmatmul.bf16.gmra.mxu0 %v855
      %v870 = vpop.f32.mrf.mxu0
      %v871 = vadd.f32 %v744, %v870
      %v872 = vpop.f32.mrf.mxu0
      %v873 = vadd.f32 %v744, %v872
      %874 = vdwg.mxu0
      %v875 = vsel %vm772, %v871, -inf
      %876 = vmax.xlane.f32.xlu0 %v875
      %v877 = vpop.xlane.xlu0 %876
      %v878 = vsel %vm776, %v873, -inf
      %879 = vmax.xlane.f32.xlu0 %v878
      %v880 = vpop.xlane.xlu0 %879
      %v881 = vsub.f32 %v871, %v877
      %v882 = vsub.f32 %v873, %v880
      %v883 = vmul.f32 %v881, 1.442695
      %v884 = vpow.pop %v883
      %v885 = vmul.f32 %v882, 1.442695
      %v886 = vpow.pop %v885
      %v887 = vsel %vm772, %v884, 0.0
      %888 = vadd.xlane.f32.xlu0 %v887
      %v889 = vpop.xlane.xlu0 %888
      %v890 = vsel %vm776, %v886, 0.0
      %891 = vadd.xlane.f32.xlu0 %v890
      %v892 = vpop.xlane.xlu0 %891
      %v893 = vrcp.pop %v889
      %v894 = vmul.f32 %v889, %v893
      %v895 = vsub.f32 1.0, %v894
      %v896 = vmul.f32 %v893, %v895
      %v897 = vadd.f32 %v893, %v896
      %vm898 = vweird.f32 %v889
      %vm899 = vweird.f32 %v893
      %vm900 = vmor %vm898, %vm899
      %v901 = vsel %vm900, %v893, %v897
      %v902 = vand.u32 2147483647, %v889
      %vm903 = vcmp.eq.f32.partialorder %v902, 8.507059e+37
      %v904 = vand.u32 %v889, 2147483648
      %v905 = vor.u32 1.1754944e-38, %v904
      %v906 = vsel %vm903, %v905, %v901
      %v907 = vrcp.pop %v892
      %v908 = vmul.f32 %v892, %v907
      %v909 = vsub.f32 1.0, %v908
      %v910 = vmul.f32 %v907, %v909
      %v911 = vadd.f32 %v907, %v910
      %vm912 = vweird.f32 %v892
      %vm913 = vweird.f32 %v907
      %vm914 = vmor %vm912, %vm913
      %v915 = vsel %vm914, %v907, %v911
      %v916 = vand.u32 2147483647, %v892
      %vm917 = vcmp.eq.f32.partialorder %v916, 8.507059e+37
      %v918 = vand.u32 %v892, 2147483648
      %v919 = vor.u32 1.1754944e-38, %v918
      %v920 = vsel %vm917, %v919, %v915
      %v921 = vmul.f32 %v884, %v906
      %v922 = vmul.f32 %v886, %v920
      %v923 = vpack.c.bf16 %v922, %v921
      %v924 = vunpack.c.h.b16 %v739
      %v925 = vunpack.c.h.b16 %v742
      %v926 = vpack.c.b16 %v925, %v924
      %v928 = vsel %vm772, %v923, 0
      %v931 = vsel %vm831, %v926, 0
      %933 = vmatpush.bf16.msra.mxu0 0
      %934 = vmatpush.bf16.msra.mxu0 0
      %935 = vmatpush.bf16.msra.mxu0 0
      %936 = vmatpush.bf16.msra.mxu0 0
      %937 = vmatpush.bf16.msra.mxu0 0
      %938 = vmatpush.bf16.msra.mxu0 0
      %939 = vmatpush.bf16.msra.mxu0 0
      %940 = vmatpush.bf16.msra.mxu0 %v931
      %941 = vmatmul.bf16.gmra.mxu0 %v928
      %v942 = vpop.f32.mrf.mxu0
      %v943 = vadd.f32 0.0, %v942
      %v944 = vpop.f32.mrf.mxu0
      %v945 = vadd.f32 0.0, %v944
      %946 = vdwg.mxu0
      %v947 = vpack.c.bf16 %v943, %v943
      %v948 = vpack.c.bf16 %v945, %v945
      %949 = vst [vmem:[#allocation2 + $0x4] sm:$0xf] %v947
      %950 = vst [vmem:[#allocation2 + $0xc] sm:$0x1] %v948
      %v951 = vld [vmem:[#allocation2] sm:$0xff]
      %v952 = vld [vmem:[#allocation2 + $0x8] sm:$0x11]
      %v953 = vld [vmem:[%s4] sm:$0xf]
      %v954 = vld [vmem:[%s4 + $0x4] sm:$0xf]
      %v955 = vld [vmem:[%s4 + $0x8] sm:$0xf]
      %v956 = vld [vmem:[%s4 + $0xc] sm:$0xf]
      %v957 = vld [vmem:[%s4 + $0x10] sm:$0xf]
      %v958 = vld [vmem:[%s4 + $0x14] sm:$0xf]
      %v959 = vld [vmem:[%s4 + $0x18] sm:$0xf]
      %v960 = vld [vmem:[%s4 + $0x1c] sm:$0xf]
      %v961 = vld [vmem:[%s4 + $0x20] sm:$0xf]
      %v962 = vld [vmem:[%s4 + $0x24] sm:$0xf]
      %v963 = vld [vmem:[%s4 + $0x28] sm:$0xf]
      %v964 = vld [vmem:[%s4 + $0x2c] sm:$0xf]
      %v965 = vld [vmem:[%s4 + $0x30] sm:$0xf]
      %v966 = vld [vmem:[%s4 + $0x34] sm:$0xf]
      %v967 = vld [vmem:[%s4 + $0x38] sm:$0xf]
      %v968 = vld [vmem:[%s4 + $0x3c] sm:$0xf]
      %v969 = vld [vmem:[%s4 + $0x40] sm:$0xf]
      %v970 = vld [vmem:[%s4 + $0x44] sm:$0xf]
      %v971 = vld [vmem:[%s4 + $0x48] sm:$0xf]
      %v972 = vld [vmem:[%s4 + $0x4c] sm:$0xf]
      %v973 = vld [vmem:[%s4 + $0x50] sm:$0xf]
      %v974 = vld [vmem:[%s4 + $0x54] sm:$0xf]
      %v975 = vld [vmem:[%s4 + $0x58] sm:$0xf]
      %v976 = vld [vmem:[%s4 + $0x5c] sm:$0xf]
      %v977 = vld [vmem:[%s4 + $0x60] sm:$0xf]
      %v978 = vld [vmem:[%s4 + $0x64] sm:$0xf]
      %v979 = vld [vmem:[%s4 + $0x68] sm:$0xf]
      %v980 = vld [vmem:[%s4 + $0x6c] sm:$0xf]
      %v981 = vld [vmem:[%s4 + $0x70] sm:$0xf]
      %v982 = vld [vmem:[%s4 + $0x74] sm:$0xf]
      %v983 = vld [vmem:[%s4 + $0x78] sm:$0xf]
      %v984 = vld [vmem:[%s4 + $0x7c] sm:$0xf]
      %v985 = vld [vmem:[%s5] sm:$0x1]
      %v987 = vperm.slane %v985, 0
      %v991 = vunpack.c.l.b16 %v951
      %v992 = vunpack.c.h.b16 %v951
      %v993 = vunpack.c.l.b16 %v952
      %v994 = vunpack.c.h.b16 %v952
      %v995 = vpack.c.b16 %v993, %v991
      %v996 = vpack.c.b16 %v994, %v992
      %v1031 = vunpack.c.l.b16 %v953
      %v1032 = vunpack.c.l.b16 %v954
      %v1033 = vunpack.c.l.b16 %v955
      %v1034 = vunpack.c.l.b16 %v956
      %v1035 = vunpack.c.l.b16 %v957
      %v1036 = vunpack.c.l.b16 %v958
      %v1037 = vunpack.c.l.b16 %v959
      %v1038 = vunpack.c.l.b16 %v960
      %v1039 = vunpack.c.l.b16 %v961
      %v1040 = vunpack.c.l.b16 %v962
      %v1041 = vunpack.c.l.b16 %v963
      %v1042 = vunpack.c.l.b16 %v964
      %v1043 = vunpack.c.l.b16 %v965
      %v1044 = vunpack.c.l.b16 %v966
      %v1045 = vunpack.c.l.b16 %v967
      %v1046 = vunpack.c.l.b16 %v968
      %v1047 = vunpack.c.l.b16 %v969
      %v1048 = vunpack.c.l.b16 %v970
      %v1049 = vunpack.c.l.b16 %v971
      %v1050 = vunpack.c.l.b16 %v972
      %v1051 = vunpack.c.l.b16 %v973
      %v1052 = vunpack.c.l.b16 %v974
      %v1053 = vunpack.c.l.b16 %v975
      %v1054 = vunpack.c.l.b16 %v976
      %v1055 = vunpack.c.l.b16 %v977
      %v1056 = vunpack.c.l.b16 %v978
      %v1057 = vunpack.c.l.b16 %v979
      %v1058 = vunpack.c.l.b16 %v980
      %v1059 = vunpack.c.l.b16 %v981
      %v1060 = vunpack.c.l.b16 %v982
      %v1061 = vunpack.c.l.b16 %v983
      %v1062 = vunpack.c.l.b16 %v984
      %v1063 = vpack.c.b16 %v1032, %v1031
      %v1064 = vpack.c.b16 %v1034, %v1033
      %v1065 = vpack.c.b16 %v1036, %v1035
      %v1066 = vpack.c.b16 %v1038, %v1037
      %v1067 = vpack.c.b16 %v1040, %v1039
      %v1068 = vpack.c.b16 %v1042, %v1041
      %v1069 = vpack.c.b16 %v1044, %v1043
      %v1070 = vpack.c.b16 %v1046, %v1045
      %v1071 = vpack.c.b16 %v1048, %v1047
      %v1072 = vpack.c.b16 %v1050, %v1049
      %v1073 = vpack.c.b16 %v1052, %v1051
      %v1074 = vpack.c.b16 %v1054, %v1053
      %v1075 = vpack.c.b16 %v1056, %v1055
      %v1076 = vpack.c.b16 %v1058, %v1057
      %v1077 = vpack.c.b16 %v1060, %v1059
      %v1078 = vpack.c.b16 %v1062, %v1061
      %1095 = vmatpush.bf16.msra.mxu0 %v1070
      %1096 = vmatpush.bf16.msra.mxu0 %v1069
      %1097 = vmatpush.bf16.msra.mxu0 %v1068
      %1098 = vmatpush.bf16.msra.mxu0 %v1067
      %1099 = vmatpush.bf16.msra.mxu0 %v1066
      %1100 = vmatpush.bf16.msra.mxu0 %v1065
      %1101 = vmatpush.bf16.msra.mxu0 %v1064
      %1102 = vmatpush.bf16.msra.mxu0 %v1063
      %1103 = vmatmul.bf16.gmra.mxu0 %v995
      %v1104 = vpop.f32.mrf.mxu0
      %v1105 = vadd.f32 %v987, %v1104
      %v1106 = vpop.f32.mrf.mxu0
      %v1107 = vadd.f32 %v987, %v1106
      %1108 = vdwg.mxu0
      %1109 = vmatpush.bf16.msra.mxu0 %v1078
      %1110 = vmatpush.bf16.msra.mxu0 %v1077
      %1111 = vmatpush.bf16.msra.mxu0 %v1076
      %1112 = vmatpush.bf16.msra.mxu0 %v1075
      %1113 = vmatpush.bf16.msra.mxu0 %v1074
      %1114 = vmatpush.bf16.msra.mxu0 %v1073
      %1115 = vmatpush.bf16.msra.mxu0 %v1072
      %1116 = vmatpush.bf16.msra.mxu0 %v1071
      %1117 = vmatmul.bf16.gmra.mxu0 %v996
      %v1118 = vpop.f32.mrf.mxu0
      %v1119 = vadd.f32 %v1105, %v1118
      %v1120 = vpop.f32.mrf.mxu0
      %v1121 = vadd.f32 %v1107, %v1120
      %1122 = vdwg.mxu0
      %v1123 = vunpack.c.l.bf16 %v483
      %v1124 = vunpack.c.l.bf16 %v484
      %v1125 = vadd.f32 %v1119, %v1123
      %v1126 = vadd.f32 %v1121, %v1124
      %v1127 = vld [vmem:[%s6] sm:$0x1]
      %v1128 = vld [vmem:[%s7] sm:$0x1]
      %v1129 = vsel %vm649, %v1125, 0.0
      %1130 = vadd.xlane.f32.xlu0 %v1129
      %v1131 = vpop.xlane.xlu0 %1130
      %vm1132 = vcmask 517120
      %v1133 = vsel %vm1132, %v1126, 0.0
      %1134 = vadd.xlane.f32.xlu0 %v1133
      %v1135 = vpop.xlane.xlu0 %1134
      %v1136 = vrcp.pop 64.0
      %v1137 = vmul.f32 64.0, %v1136
      %v1138 = vsub.f32 1.0, %v1137
      %v1139 = vmul.f32 %v1136, %v1138
      %v1140 = vadd.f32 %v1136, %v1139
      %vm1141 = vweird.f32 %v1136
      %v1142 = vsel %vm1141, %v1136, %v1140
      %v1143 = vmul.f32 %v1131, %v1142
      %v1144 = vmul.f32 %v1135, %v1142
      %v1145 = vsub.f32 %v1125, %v1143
      %v1146 = vsub.f32 %v1126, %v1144
      %v1147 = vmul.f32 %v1145, %v1145
      %v1148 = vmul.f32 %v1146, %v1146
      %v1149 = vsel %vm649, %v1147, 0.0
      %1150 = vadd.xlane.f32.xlu0 %v1149
      %v1151 = vpop.xlane.xlu0 %1150
      %v1152 = vsel %vm1132, %v1148, 0.0
      %1153 = vadd.xlane.f32.xlu0 %v1152
      %v1154 = vpop.xlane.xlu0 %1153
      %v1155 = vmul.f32 %v1151, %v1142
      %v1156 = vmul.f32 %v1154, %v1142
      %v1157 = vadd.f32 %v1155, 1e-12
      %v1158 = vadd.f32 %v1156, 1e-12
      %v1159 = vrsqrt.pop %v1157
      %v1160 = vmul.f32 %v1159, %v1157
      %v1161 = vmul.f32 %v1160, %v1159
      %v1162 = vmul.f32 0.5, %v1161
      %v1163 = vsub.f32 1.5, %v1162
      %v1164 = vmul.f32 %v1159, %v1163
      %vm1165 = vweird.f32 %v1157
      %vm1166 = vweird.f32 %v1159
      %vm1167 = vmor %vm1165, %vm1166
      %v1168 = vsel %vm1167, %v1159, %v1164
      %v1169 = vrsqrt.pop %v1158
      %v1170 = vmul.f32 %v1169, %v1158
      %v1171 = vmul.f32 %v1170, %v1169
      %v1172 = vmul.f32 0.5, %v1171
      %v1173 = vsub.f32 1.5, %v1172
      %v1174 = vmul.f32 %v1169, %v1173
      %vm1175 = vweird.f32 %v1158
      %vm1176 = vweird.f32 %v1169
      %vm1177 = vmor %vm1175, %vm1176
      %v1178 = vsel %vm1177, %v1169, %v1174
      %v1179 = vmul.f32 %v1145, %v1168
      %v1180 = vmul.f32 %v1146, %v1178
      %v1182 = vperm.slane %v1127, 0
      %v1184 = vmul.f32 %v1179, %v1182
      %v1185 = vmul.f32 %v1180, %v1182
      %v1187 = vperm.slane %v1128, 0
      %v1189 = vadd.f32 %v1184, %v1187
      %v1190 = vadd.f32 %v1185, %v1187
      %v1191 = vpack.c.bf16 %v1190, %v1189
      %v1192 = vld [vmem:[%s8] sm:$0xf]
      %v1193 = vld [vmem:[%s8 + $0x4] sm:$0xf]
      %v1194 = vld [vmem:[%s8 + $0x8] sm:$0xf]
      %v1195 = vld [vmem:[%s8 + $0xc] sm:$0xf]
      %v1196 = vld [vmem:[%s8 + $0x10] sm:$0xf]
      %v1197 = vld [vmem:[%s8 + $0x14] sm:$0xf]
      %v1198 = vld [vmem:[%s8 + $0x18] sm:$0xf]
      %v1199 = vld [vmem:[%s8 + $0x1c] sm:$0xf]
      %v1200 = vld [vmem:[%s9] sm:$0x1]
      %v1202 = vperm.slane %v1200, 0
      %v1212 = vunpack.c.l.b16 %v1192
      %v1213 = vunpack.c.l.b16 %v1193
      %v1214 = vunpack.c.l.b16 %v1194
      %v1215 = vunpack.c.l.b16 %v1195
      %v1216 = vunpack.c.l.b16 %v1196
      %v1217 = vunpack.c.l.b16 %v1197
      %v1218 = vunpack.c.l.b16 %v1198
      %v1219 = vunpack.c.l.b16 %v1199
      %v1220 = vpack.c.b16 %v1213, %v1212
      %v1221 = vpack.c.b16 %v1215, %v1214
      %v1222 = vpack.c.b16 %v1217, %v1216
      %v1223 = vpack.c.b16 %v1219, %v1218
      %v1229 = vsel %vm649, %v1191, 0
      %1231 = vmatpush.bf16.msra.mxu0 0
      %1232 = vmatpush.bf16.msra.mxu0 0
      %1233 = vmatpush.bf16.msra.mxu0 0
      %1234 = vmatpush.bf16.msra.mxu0 0
      %1235 = vmatpush.bf16.msra.mxu0 %v1223
      %1236 = vmatpush.bf16.msra.mxu0 %v1222
      %1237 = vmatpush.bf16.msra.mxu0 %v1221
      %1238 = vmatpush.bf16.msra.mxu0 %v1220
      %1239 = vmatmul.bf16.gmra.mxu0 %v1229
      %v1240 = vpop.f32.mrf.mxu0
      %v1241 = vadd.f32 %v1202, %v1240
      %v1242 = vpop.f32.mrf.mxu0
      %v1243 = vadd.f32 %v1202, %v1242
      %1244 = vdwg.mxu0
      %v1245 = vmul.f32 %v1241, 0.5
      %v1246 = vmul.f32 %v1243, 0.5
      %v1247 = vmul.f32 %v1241, 0.044715
      %v1248 = vmul.f32 %v1243, 0.044715
      %v1249 = vmul.f32 %v1247, %v1241
      %v1250 = vmul.f32 %v1248, %v1243
      %v1251 = vmul.f32 %v1249, %v1241
      %v1252 = vmul.f32 %v1250, %v1243
      %v1253 = vadd.f32 %v1241, %v1251
      %v1254 = vadd.f32 %v1243, %v1252
      %v1255 = vmul.f32 %v1253, 0.7978846
      %v1256 = vmul.f32 %v1254, 0.7978846
      %v1257 = vtanh.pop %v1255
      %v1258 = vtanh.pop %v1256
      %v1259 = vadd.f32 %v1257, 1.0
      %v1260 = vadd.f32 %v1258, 1.0
      %v1261 = vmul.f32 %v1245, %v1259
      %v1262 = vmul.f32 %v1246, %v1260
      %v1263 = vpack.c.bf16 %v1262, %v1261
      %v1264 = vld [vmem:[%s10] sm:$0xf]
      %v1265 = vld [vmem:[%s10 + $0x4] sm:$0xf]
      %v1266 = vld [vmem:[%s10 + $0x8] sm:$0xf]
      %v1267 = vld [vmem:[%s10 + $0xc] sm:$0xf]
      %v1268 = vld [vmem:[%s10 + $0x10] sm:$0xf]
      %v1269 = vld [vmem:[%s10 + $0x14] sm:$0xf]
      %v1270 = vld [vmem:[%s10 + $0x18] sm:$0xf]
      %v1271 = vld [vmem:[%s10 + $0x1c] sm:$0xf]
      %v1272 = vld [vmem:[%s10 + $0x20] sm:$0xf]
      %v1273 = vld [vmem:[%s10 + $0x24] sm:$0xf]
      %v1274 = vld [vmem:[%s10 + $0x28] sm:$0xf]
      %v1275 = vld [vmem:[%s10 + $0x2c] sm:$0xf]
      %v1276 = vld [vmem:[%s10 + $0x30] sm:$0xf]
      %v1277 = vld [vmem:[%s10 + $0x34] sm:$0xf]
      %v1278 = vld [vmem:[%s10 + $0x38] sm:$0xf]
      %v1279 = vld [vmem:[%s10 + $0x3c] sm:$0xf]
      %v1280 = vld [vmem:[%s11] sm:$0x1]
      %v1282 = vperm.slane %v1280, 0
      %v1300 = vunpack.c.l.b16 %v1264
      %v1301 = vunpack.c.l.b16 %v1265
      %v1302 = vunpack.c.l.b16 %v1266
      %v1303 = vunpack.c.l.b16 %v1267
      %v1304 = vunpack.c.l.b16 %v1268
      %v1305 = vunpack.c.l.b16 %v1269
      %v1306 = vunpack.c.l.b16 %v1270
      %v1307 = vunpack.c.l.b16 %v1271
      %v1308 = vunpack.c.l.b16 %v1272
      %v1309 = vunpack.c.l.b16 %v1273
      %v1310 = vunpack.c.l.b16 %v1274
      %v1311 = vunpack.c.l.b16 %v1275
      %v1312 = vunpack.c.l.b16 %v1276
      %v1313 = vunpack.c.l.b16 %v1277
      %v1314 = vunpack.c.l.b16 %v1278
      %v1315 = vunpack.c.l.b16 %v1279
      %v1316 = vpack.c.b16 %v1301, %v1300
      %v1317 = vpack.c.b16 %v1303, %v1302
      %v1318 = vpack.c.b16 %v1305, %v1304
      %v1319 = vpack.c.b16 %v1307, %v1306
      %v1320 = vpack.c.b16 %v1309, %v1308
      %v1321 = vpack.c.b16 %v1311, %v1310
      %v1322 = vpack.c.b16 %v1313, %v1312
      %v1323 = vpack.c.b16 %v1315, %v1314
      %1332 = vmatpush.bf16.msra.mxu0 %v1323
      %1333 = vmatpush.bf16.msra.mxu0 %v1322
      %1334 = vmatpush.bf16.msra.mxu0 %v1321
      %1335 = vmatpush.bf16.msra.mxu0 %v1320
      %1336 = vmatpush.bf16.msra.mxu0 %v1319
      %1337 = vmatpush.bf16.msra.mxu0 %v1318
      %1338 = vmatpush.bf16.msra.mxu0 %v1317
      %1339 = vmatpush.bf16.msra.mxu0 %v1316
      %1340 = vmatmul.bf16.gmra.mxu0 %v1263
      %v1341 = vpop.f32.mrf.mxu0
      %v1342 = vadd.f32 %v1282, %v1341
      %v1343 = vpop.f32.mrf.mxu0
      %v1344 = vadd.f32 %v1282, %v1343
      %1345 = vdwg.mxu0
      %v1346 = vadd.f32 %v1342, %v1189
      %v1347 = vadd.f32 %v1344, %v1190
      %v1348 = vld [vmem:[%s12] sm:$0x1]
      %v1349 = vld [vmem:[%s13] sm:$0x1]
      %v1350 = vsel %vm649, %v1346, 0.0
      %1351 = vadd.xlane.f32.xlu0 %v1350
      %v1352 = vpop.xlane.xlu0 %1351
      %v1353 = vsel %vm1132, %v1347, 0.0
      %1354 = vadd.xlane.f32.xlu0 %v1353
      %v1355 = vpop.xlane.xlu0 %1354
      %v1356 = vmul.f32 %v1352, %v1142
      %v1357 = vmul.f32 %v1355, %v1142
      %v1358 = vsub.f32 %v1346, %v1356
      %v1359 = vsub.f32 %v1347, %v1357
      %v1360 = vmul.f32 %v1358, %v1358
      %v1361 = vmul.f32 %v1359, %v1359
      %v1362 = vsel %vm649, %v1360, 0.0
      %1363 = vadd.xlane.f32.xlu0 %v1362
      %v1364 = vpop.xlane.xlu0 %1363
      %v1365 = vsel %vm1132, %v1361, 0.0
      %1366 = vadd.xlane.f32.xlu0 %v1365
      %v1367 = vpop.xlane.xlu0 %1366
      %v1368 = vmul.f32 %v1364, %v1142
      %v1369 = vmul.f32 %v1367, %v1142
      %v1370 = vadd.f32 %v1368, 1e-12
      %v1371 = vadd.f32 %v1369, 1e-12
      %v1372 = vrsqrt.pop %v1370
      %v1373 = vmul.f32 %v1372, %v1370
      %v1374 = vmul.f32 %v1373, %v1372
      %v1375 = vmul.f32 0.5, %v1374
      %v1376 = vsub.f32 1.5, %v1375
      %v1377 = vmul.f32 %v1372, %v1376
      %vm1378 = vweird.f32 %v1370
      %vm1379 = vweird.f32 %v1372
      %vm1380 = vmor %vm1378, %vm1379
      %v1381 = vsel %vm1380, %v1372, %v1377
      %v1382 = vrsqrt.pop %v1371
      %v1383 = vmul.f32 %v1382, %v1371
      %v1384 = vmul.f32 %v1383, %v1382
      %v1385 = vmul.f32 0.5, %v1384
      %v1386 = vsub.f32 1.5, %v1385
      %v1387 = vmul.f32 %v1382, %v1386
      %vm1388 = vweird.f32 %v1371
      %vm1389 = vweird.f32 %v1382
      %vm1390 = vmor %vm1388, %vm1389
      %v1391 = vsel %vm1390, %v1382, %v1387
      %v1392 = vmul.f32 %v1358, %v1381
      %v1393 = vmul.f32 %v1359, %v1391
      %v1395 = vperm.slane %v1348, 0
      %v1397 = vmul.f32 %v1392, %v1395
      %v1398 = vmul.f32 %v1393, %v1395
      %v1400 = vperm.slane %v1349, 0
      %v1402 = vadd.f32 %v1397, %v1400
      %v1403 = vadd.f32 %v1398, %v1400
      %v1404 = vpack.c.bf16 %v1402, %v1402
      %v1405 = vpack.c.bf16 %v1403, %v1403
      %vm1406 = vcmask 519168
      %1407 = vst.msk [vmem:[%s481] sm:$0xf] %vm1406, %v1404
      %vm1408 = vcmask 516096
      %1409 = vst.msk [vmem:[%s481 + $0x4] sm:$0x1] %vm1408, %v1405
      %p1410 = scmp.lt.s32.totalorder %s25, 1
      %s1411 = scalar_select %p1410, %s25, 1
      %s1412 = smul.addr %s1411, 2
      %s1413 = smul.addr %s1412, 4
      %s1414 = scalar_lea.vmem %s14, %s1413
      // Predicated region
      $region77: #{encoder_forward.4} parent=75 // pred_check
        %p1415 = pneg %p347
      $region78: #{encoder_forward.4} parent=75 // pred_check_branch
        %1417 = sbr.rel (%p1415) target = $region80
      $region79: #{encoder_forward.4} parent=75 // pred_region
        _
      $region80: #{encoder_forward.4} parent=75 // pred_fallthru
        _
    $region76: #{encoder_forward.4} parent=5 // pred_fallthru
      _
    %p1418 = scmp.le.s32.totalorder 2, %s20
    // Predicated region
    $region81: #{encoder_forward.4} parent=5 // pred_check
      %p1419 = pneg %p1418
    $region82: #{encoder_forward.4} parent=5 // pred_check_branch
      %1421 = sbr.rel (%p1419) target = $region84
    $region83: #{encoder_forward.4} parent=5 // pred_region
      %s1422 = ssub.s32 %s20, 2
      // Predicated region
      $region85: #{encoder_forward.4} parent=83 // pred_check
        %p1423 = pneg %p353
      $region86: #{encoder_forward.4} parent=83 // pred_check_branch
        %1425 = sbr.rel (%p1423) target = $region88
      $region87: #{encoder_forward.4} parent=83 // pred_region
        %p1426 = scmp.lt.s32.totalorder %s26, 1
        %s1427 = scalar_select %p1426, %s26, 1
        %s1428 = smul.addr %s1427, 2
        %s1429 = smul.addr %s1428, 4
        %s1430 = scalar_lea.vmem %s14, %s1429
      $region88: #{encoder_forward.4} parent=83 // pred_fallthru
        _
    $region84: #{encoder_forward.4} parent=5 // pred_fallthru
      _
  $region6: #{encoder_forward.4} parent=0 // loop_footer
    %s24 = sadd.s32 1, %s20
  $region7: #{encoder_forward.4} parent=0 // loop_footer_branch
    %19 = sbr.rel target = $region3
  $region8: #{encoder_forward.4} parent=0 // loop_exit
    _

</llo_original>
